<compile_context>
chip_gen: v6e
topology: v6e:2x2x1
jax: 0.10.0
libtpu: 0.0.40
codegen_flags: <defaults>
</compile_context>

<pallas_src>
import functools
import numpy as np
import jax
import jax.numpy as jnp
from jax.experimental import pallas as pl
from jax.experimental.pallas import tpu as pltpu


def _bilinear_matrix(n_in: int, scale: int) -> np.ndarray:
    """1-D bilinear interpolation matrix matching PyTorch Upsample(align_corners=False)."""
    n_out = n_in * scale
    U = np.zeros((n_out, n_in), dtype=np.float32)
    for o in range(n_out):
        src = (o + 0.5) / scale - 0.5
        src = max(src, 0.0)
        i0 = int(np.floor(src))
        i1 = min(i0 + 1, n_in - 1)
        frac = src - i0
        U[o, i0] += 1.0 - frac
        U[o, i1] += frac
    return U


def _bilinear_upsampler_kernel(x_ref, wexp_ref, bias_ref, uwt_ref, uhb_ref, o_ref, t_ref,
                               *, cin, h, w, k):
    # x_ref:    VMEM (1, Cin, H+2, W+2)        zero-padded input, one batch element
    # wexp_ref: VMEM (Cout*H, Cin*K*K*H)       block-structured conv weights kron(w2, I_H)
    # bias_ref: VMEM (Cout*H, 1)               per-row bias column
    # uwt_ref:  VMEM (W, 2W)                   U_w^T (width upsample)
    # uhb_ref:  VMEM (Cout*2H, Cout*H)         blockdiag(U_h) (height upsample, all channels)
    # o_ref:    VMEM (1, Cout*2H, 2W)          NCHW-contiguous output slab
    # t_ref:    VMEM (Cin*K*K*H, W) scratch    sublane-stacked im2col taps

    # ---- in-kernel im2col: 36 static slice -> store copies into the tap matrix T ----
    # Each tap is written immediately (bounded live range, no vreg-file pressure).
    for ci in range(cin):
        for dy in range(k):
            for dx in range(k):
                j = (ci * k + dy) * k + dx
                t_ref[j * h:(j + 1) * h, :] = x_ref[0, ci, dy:dy + h, dx:dx + w]

    # ---- 3x3 conv for ALL output channels: one MXU matmul + bias column ----
    acc = jnp.dot(wexp_ref[...], t_ref[...],
                  preferred_element_type=jnp.float32)          # (Cout*H, W)
    acc = acc + bias_ref[...]                                   # + (Cout*H, 1) broadcast

    # ---- separable x2 bilinear upsample, channel-batched on the MXU ----
    zw = jnp.dot(acc, uwt_ref[...],
                 preferred_element_type=jnp.float32)            # (Cout*H, 2W)
    zh = jnp.dot(uhb_ref[...], zw,
                 preferred_element_type=jnp.float32)            # (Cout*2H, 2W)

    # Single consolidated store of the whole NCHW-contiguous output slab + ReLU.
    o_ref[0] = jnp.maximum(zh, 0.0)


def bilinear_upsampler(x_nchw, weight, bias, *, kernel_size=3, upscale_factor=2):
    """x_nchw: (B, Cin, H, W) f32. weight: (Cout, Cin, K, K). bias: (Cout,). Returns NCHW."""
    B, Cin, H, W = x_nchw.shape
    Cout = weight.shape[0]
    K = kernel_size
    S = upscale_factor
    OH, OW = H * S, W * S

    # Plain-JAX glue: zero padding (pad=1).  Taps are formed inside the kernel.
    xpad = jnp.pad(x_nchw, ((0, 0), (0, 0), (1, 1), (1, 1)))

    # Block-structured conv operator: W_exp[co*H + r, j*H + r] = w2[co, j].
    w2 = weight.reshape(Cout, Cin * K * K).astype(jnp.float32)
    W_exp = jnp.kron(w2, jnp.eye(H, dtype=jnp.float32))          # (Cout*H, Cin*K*K*H)
    bias_col = jnp.repeat(bias.astype(jnp.float32), H).reshape(Cout * H, 1)

    U_h = jnp.asarray(_bilinear_matrix(H, S))                    # (2H, H)
    U_wT = jnp.asarray(_bilinear_matrix(W, S).T)                 # (W, 2W)
    U_h_blk = jnp.kron(jnp.eye(Cout, dtype=jnp.float32), U_h)    # (Cout*2H, Cout*H)

    kernel = functools.partial(_bilinear_upsampler_kernel, cin=Cin, h=H, w=W, k=K)

    out_flat = pl.pallas_call(
        kernel,
        out_shape=jax.ShapeDtypeStruct((B, Cout * OH, OW), jnp.float32),
        grid=(B,),
        in_specs=[
            pl.BlockSpec((1, Cin, H + 2, W + 2), lambda b: (b, 0, 0, 0)),  # padded input
            pl.BlockSpec((Cout * H, Cin * K * K * H), lambda b: (0, 0)),   # W_exp
            pl.BlockSpec((Cout * H, 1), lambda b: (0, 0)),                 # bias column
            pl.BlockSpec((W, OW), lambda b: (0, 0)),                       # U_w^T
            pl.BlockSpec((Cout * OH, Cout * H), lambda b: (0, 0)),         # blockdiag(U_h)
        ],
        out_specs=pl.BlockSpec((1, Cout * OH, OW), lambda b: (b, 0, 0)),
        scratch_shapes=[pltpu.VMEM((Cin * K * K * H, W), jnp.float32)],    # tap matrix T
        compiler_params=pltpu.CompilerParams(dimension_semantics=("parallel",)),
    )(xpad, W_exp, bias_col, U_wT, U_h_blk)

    # Metadata-only reshape: (B, Cout*OH, OW) is already NCHW-contiguous.
    return out_flat.reshape(B, Cout, OH, OW)


def _reference(x_nchw, weight, bias, upscale_factor=2):
    """Pure-JAX reference (conv + align_corners=False bilinear + relu)."""
    conv = jax.lax.conv_general_dilated(
        x_nchw, weight, window_strides=(1, 1), padding=((1, 1), (1, 1)),
        dimension_numbers=("NCHW", "OIHW", "NCHW"))
    conv = conv + bias[None, :, None, None]
    H, W = x_nchw.shape[2], x_nchw.shape[3]
    U_h = jnp.asarray(_bilinear_matrix(H, upscale_factor))
    U_w = jnp.asarray(_bilinear_matrix(W, upscale_factor))
    up = jnp.einsum("ph,qw,bchw->bcpq", U_h, U_w, conv)
    return jnp.maximum(up, 0.0)


if __name__ == "__main__":
    B, Cin, Cout, H, W = 2, 4, 8, 16, 16

    key = jax.random.PRNGKey(0)
    kx, kw, kb = jax.random.split(key, 3)
    x = jax.random.normal(kx, (B, Cin, H, W), dtype=jnp.float32)
    weight = 0.1 * jax.random.normal(kw, (Cout, Cin, 3, 3), dtype=jnp.float32)
    bias = 0.1 * jax.random.normal(kb, (Cout,), dtype=jnp.float32)

    out = jax.block_until_ready(bilinear_upsampler(x, weight, bias))
    ref = jax.block_until_ready(_reference(x, weight, bias))

    assert out.shape == (B, Cout, H * 2, W * 2), out.shape
    np.testing.assert_allclose(np.asarray(out), np.asarray(ref), atol=1e-4, rtol=1e-4)

    print("KERNEL_OK")
</pallas_src>

<mosaic_0001>
module attributes {stable_mosaic.version = 11 : i64} {
  func.func @_bilinear_upsampler_kernel(%arg0: i32, %arg1: memref<1x4x18x18xf32, #tpu.memory_space<vmem>>, %arg2: memref<128x576xf32, #tpu.memory_space<vmem>>, %arg3: memref<128x1xf32, #tpu.memory_space<vmem>>, %arg4: memref<16x32xf32, #tpu.memory_space<vmem>>, %arg5: memref<256x128xf32, #tpu.memory_space<vmem>>, %arg6: memref<1x256x32xf32, #tpu.memory_space<vmem>>, %arg7: memref<576x16xf32, #tpu.memory_space<vmem>>) attributes {dimension_semantics = [#tpu.dimension_semantics<parallel>], iteration_bounds = array<i64: 2>, scalar_prefetch = 0 : i64, scratch_operands = 1 : i64, tpu.core_type = #tpu.core_type<tc>, window_params = [{transform_indices = @transform_0, window_bounds = array<i64: 1, 4, 18, 18>}, {pipeline_mode = #tpu.pipeline_mode<synchronous>, transform_indices = @transform_1, window_bounds = array<i64: 128, 576>}, {pipeline_mode = #tpu.pipeline_mode<synchronous>, transform_indices = @transform_2, window_bounds = array<i64: 128, 1>}, {pipeline_mode = #tpu.pipeline_mode<synchronous>, transform_indices = @transform_3, window_bounds = array<i64: 16, 32>}, {pipeline_mode = #tpu.pipeline_mode<synchronous>, transform_indices = @transform_4, window_bounds = array<i64: 256, 128>}, {transform_indices = @transform_5, window_bounds = array<i64: 1, 256, 32>}]} {
    %c0 = arith.constant 0 : index
    %c0_0 = arith.constant 0 : index
    %c0_1 = arith.constant 0 : index
    %c0_2 = arith.constant 0 : index
    %0 = vector.load %arg1[%c0, %c0_0, %c0_1, %c0_2] : memref<1x4x18x18xf32, #tpu.memory_space<vmem>>, vector<1x1x16x16xf32>
    %1 = vector.shape_cast %0 : vector<1x1x16x16xf32> to vector<16x16xf32>
    %c0_3 = arith.constant 0 : index
    %c0_4 = arith.constant 0 : index
    %2 = vector.load %arg7[%c0_3, %c0_4] : memref<576x16xf32, #tpu.memory_space<vmem>>, vector<16x16xf32>
    tpu.vector_store %arg7[%c0_3, %c0_4], %1 {strides = array<i32>} : memref<576x16xf32, #tpu.memory_space<vmem>>, vector<16x16xf32>,
    %c0_5 = arith.constant 0 : index
    %c0_6 = arith.constant 0 : index
    %c0_7 = arith.constant 0 : index
    %c1 = arith.constant 1 : index
    %3 = vector.load %arg1[%c0_5, %c0_6, %c0_7, %c1] : memref<1x4x18x18xf32, #tpu.memory_space<vmem>>, vector<1x1x16x16xf32>
    %4 = vector.shape_cast %3 : vector<1x1x16x16xf32> to vector<16x16xf32>
    %c16 = arith.constant 16 : index
    %c0_8 = arith.constant 0 : index
    %5 = vector.load %arg7[%c16, %c0_8] : memref<576x16xf32, #tpu.memory_space<vmem>>, vector<16x16xf32>
    tpu.vector_store %arg7[%c16, %c0_8], %4 {strides = array<i32>} : memref<576x16xf32, #tpu.memory_space<vmem>>, vector<16x16xf32>,
    %c0_9 = arith.constant 0 : index
    %c0_10 = arith.constant 0 : index
    %c0_11 = arith.constant 0 : index
    %c2 = arith.constant 2 : index
    %6 = vector.load %arg1[%c0_9, %c0_10, %c0_11, %c2] : memref<1x4x18x18xf32, #tpu.memory_space<vmem>>, vector<1x1x16x16xf32>
    %7 = vector.shape_cast %6 : vector<1x1x16x16xf32> to vector<16x16xf32>
    %c32 = arith.constant 32 : index
    %c0_12 = arith.constant 0 : index
    %8 = vector.load %arg7[%c32, %c0_12] : memref<576x16xf32, #tpu.memory_space<vmem>>, vector<16x16xf32>
    tpu.vector_store %arg7[%c32, %c0_12], %7 {strides = array<i32>} : memref<576x16xf32, #tpu.memory_space<vmem>>, vector<16x16xf32>,
    %c0_13 = arith.constant 0 : index
    %c0_14 = arith.constant 0 : index
    %c1_15 = arith.constant 1 : index
    %c0_16 = arith.constant 0 : index
    %9 = vector.load %arg1[%c0_13, %c0_14, %c1_15, %c0_16] : memref<1x4x18x18xf32, #tpu.memory_space<vmem>>, vector<1x1x16x16xf32>
    %10 = vector.shape_cast %9 : vector<1x1x16x16xf32> to vector<16x16xf32>
    %c48 = arith.constant 48 : index
    %c0_17 = arith.constant 0 : index
    %11 = vector.load %arg7[%c48, %c0_17] : memref<576x16xf32, #tpu.memory_space<vmem>>, vector<16x16xf32>
    tpu.vector_store %arg7[%c48, %c0_17], %10 {strides = array<i32>} : memref<576x16xf32, #tpu.memory_space<vmem>>, vector<16x16xf32>,
    %c0_18 = arith.constant 0 : index
    %c0_19 = arith.constant 0 : index
    %c1_20 = arith.constant 1 : index
    %c1_21 = arith.constant 1 : index
    %12 = vector.load %arg1[%c0_18, %c0_19, %c1_20, %c1_21] : memref<1x4x18x18xf32, #tpu.memory_space<vmem>>, vector<1x1x16x16xf32>
    %13 = vector.shape_cast %12 : vector<1x1x16x16xf32> to vector<16x16xf32>
    %c64 = arith.constant 64 : index
    %c0_22 = arith.constant 0 : index
    %14 = vector.load %arg7[%c64, %c0_22] : memref<576x16xf32, #tpu.memory_space<vmem>>, vector<16x16xf32>
    tpu.vector_store %arg7[%c64, %c0_22], %13 {strides = array<i32>} : memref<576x16xf32, #tpu.memory_space<vmem>>, vector<16x16xf32>,
    %c0_23 = arith.constant 0 : index
    %c0_24 = arith.constant 0 : index
    %c1_25 = arith.constant 1 : index
    %c2_26 = arith.constant 2 : index
    %15 = vector.load %arg1[%c0_23, %c0_24, %c1_25, %c2_26] : memref<1x4x18x18xf32, #tpu.memory_space<vmem>>, vector<1x1x16x16xf32>
    %16 = vector.shape_cast %15 : vector<1x1x16x16xf32> to vector<16x16xf32>
    %c80 = arith.constant 80 : index
    %c0_27 = arith.constant 0 : index
    %17 = vector.load %arg7[%c80, %c0_27] : memref<576x16xf32, #tpu.memory_space<vmem>>, vector<16x16xf32>
    tpu.vector_store %arg7[%c80, %c0_27], %16 {strides = array<i32>} : memref<576x16xf32, #tpu.memory_space<vmem>>, vector<16x16xf32>,
    %c0_28 = arith.constant 0 : index
    %c0_29 = arith.constant 0 : index
    %c2_30 = arith.constant 2 : index
    %c0_31 = arith.constant 0 : index
    %18 = vector.load %arg1[%c0_28, %c0_29, %c2_30, %c0_31] : memref<1x4x18x18xf32, #tpu.memory_space<vmem>>, vector<1x1x16x16xf32>
    %19 = vector.shape_cast %18 : vector<1x1x16x16xf32> to vector<16x16xf32>
    %c96 = arith.constant 96 : index
    %c0_32 = arith.constant 0 : index
    %20 = vector.load %arg7[%c96, %c0_32] : memref<576x16xf32, #tpu.memory_space<vmem>>, vector<16x16xf32>
    tpu.vector_store %arg7[%c96, %c0_32], %19 {strides = array<i32>} : memref<576x16xf32, #tpu.memory_space<vmem>>, vector<16x16xf32>,
    %c0_33 = arith.constant 0 : index
    %c0_34 = arith.constant 0 : index
    %c2_35 = arith.constant 2 : index
    %c1_36 = arith.constant 1 : index
    %21 = vector.load %arg1[%c0_33, %c0_34, %c2_35, %c1_36] : memref<1x4x18x18xf32, #tpu.memory_space<vmem>>, vector<1x1x16x16xf32>
    %22 = vector.shape_cast %21 : vector<1x1x16x16xf32> to vector<16x16xf32>
    %c112 = arith.constant 112 : index
    %c0_37 = arith.constant 0 : index
    %23 = vector.load %arg7[%c112, %c0_37] : memref<576x16xf32, #tpu.memory_space<vmem>>, vector<16x16xf32>
    tpu.vector_store %arg7[%c112, %c0_37], %22 {strides = array<i32>} : memref<576x16xf32, #tpu.memory_space<vmem>>, vector<16x16xf32>,
    %c0_38 = arith.constant 0 : index
    %c0_39 = arith.constant 0 : index
    %c2_40 = arith.constant 2 : index
    %c2_41 = arith.constant 2 : index
    %24 = vector.load %arg1[%c0_38, %c0_39, %c2_40, %c2_41] : memref<1x4x18x18xf32, #tpu.memory_space<vmem>>, vector<1x1x16x16xf32>
    %25 = vector.shape_cast %24 : vector<1x1x16x16xf32> to vector<16x16xf32>
    %c128 = arith.constant 128 : index
    %c0_42 = arith.constant 0 : index
    %26 = vector.load %arg7[%c128, %c0_42] : memref<576x16xf32, #tpu.memory_space<vmem>>, vector<16x16xf32>
    tpu.vector_store %arg7[%c128, %c0_42], %25 {strides = array<i32>} : memref<576x16xf32, #tpu.memory_space<vmem>>, vector<16x16xf32>,
    %c0_43 = arith.constant 0 : index
    %c1_44 = arith.constant 1 : index
    %c0_45 = arith.constant 0 : index
    %c0_46 = arith.constant 0 : index
    %27 = vector.load %arg1[%c0_43, %c1_44, %c0_45, %c0_46] : memref<1x4x18x18xf32, #tpu.memory_space<vmem>>, vector<1x1x16x16xf32>
    %28 = vector.shape_cast %27 : vector<1x1x16x16xf32> to vector<16x16xf32>
    %c144 = arith.constant 144 : index
    %c0_47 = arith.constant 0 : index
    %29 = vector.load %arg7[%c144, %c0_47] : memref<576x16xf32, #tpu.memory_space<vmem>>, vector<16x16xf32>
    tpu.vector_store %arg7[%c144, %c0_47], %28 {strides = array<i32>} : memref<576x16xf32, #tpu.memory_space<vmem>>, vector<16x16xf32>,
    %c0_48 = arith.constant 0 : index
    %c1_49 = arith.constant 1 : index
    %c0_50 = arith.constant 0 : index
    %c1_51 = arith.constant 1 : index
    %30 = vector.load %arg1[%c0_48, %c1_49, %c0_50, %c1_51] : memref<1x4x18x18xf32, #tpu.memory_space<vmem>>, vector<1x1x16x16xf32>
    %31 = vector.shape_cast %30 : vector<1x1x16x16xf32> to vector<16x16xf32>
    %c160 = arith.constant 160 : index
    %c0_52 = arith.constant 0 : index
    %32 = vector.load %arg7[%c160, %c0_52] : memref<576x16xf32, #tpu.memory_space<vmem>>, vector<16x16xf32>
    tpu.vector_store %arg7[%c160, %c0_52], %31 {strides = array<i32>} : memref<576x16xf32, #tpu.memory_space<vmem>>, vector<16x16xf32>,
    %c0_53 = arith.constant 0 : index
    %c1_54 = arith.constant 1 : index
    %c0_55 = arith.constant 0 : index
    %c2_56 = arith.constant 2 : index
    %33 = vector.load %arg1[%c0_53, %c1_54, %c0_55, %c2_56] : memref<1x4x18x18xf32, #tpu.memory_space<vmem>>, vector<1x1x16x16xf32>
    %34 = vector.shape_cast %33 : vector<1x1x16x16xf32> to vector<16x16xf32>
    %c176 = arith.constant 176 : index
    %c0_57 = arith.constant 0 : index
    %35 = vector.load %arg7[%c176, %c0_57] : memref<576x16xf32, #tpu.memory_space<vmem>>, vector<16x16xf32>
    tpu.vector_store %arg7[%c176, %c0_57], %34 {strides = array<i32>} : memref<576x16xf32, #tpu.memory_space<vmem>>, vector<16x16xf32>,
    %c0_58 = arith.constant 0 : index
    %c1_59 = arith.constant 1 : index
    %c1_60 = arith.constant 1 : index
    %c0_61 = arith.constant 0 : index
    %36 = vector.load %arg1[%c0_58, %c1_59, %c1_60, %c0_61] : memref<1x4x18x18xf32, #tpu.memory_space<vmem>>, vector<1x1x16x16xf32>
    %37 = vector.shape_cast %36 : vector<1x1x16x16xf32> to vector<16x16xf32>
    %c192 = arith.constant 192 : index
    %c0_62 = arith.constant 0 : index
    %38 = vector.load %arg7[%c192, %c0_62] : memref<576x16xf32, #tpu.memory_space<vmem>>, vector<16x16xf32>
    tpu.vector_store %arg7[%c192, %c0_62], %37 {strides = array<i32>} : memref<576x16xf32, #tpu.memory_space<vmem>>, vector<16x16xf32>,
    %c0_63 = arith.constant 0 : index
    %c1_64 = arith.constant 1 : index
    %c1_65 = arith.constant 1 : index
    %c1_66 = arith.constant 1 : index
    %39 = vector.load %arg1[%c0_63, %c1_64, %c1_65, %c1_66] : memref<1x4x18x18xf32, #tpu.memory_space<vmem>>, vector<1x1x16x16xf32>
    %40 = vector.shape_cast %39 : vector<1x1x16x16xf32> to vector<16x16xf32>
    %c208 = arith.constant 208 : index
    %c0_67 = arith.constant 0 : index
    %41 = vector.load %arg7[%c208, %c0_67] : memref<576x16xf32, #tpu.memory_space<vmem>>, vector<16x16xf32>
    tpu.vector_store %arg7[%c208, %c0_67], %40 {strides = array<i32>} : memref<576x16xf32, #tpu.memory_space<vmem>>, vector<16x16xf32>,
    %c0_68 = arith.constant 0 : index
    %c1_69 = arith.constant 1 : index
    %c1_70 = arith.constant 1 : index
    %c2_71 = arith.constant 2 : index
    %42 = vector.load %arg1[%c0_68, %c1_69, %c1_70, %c2_71] : memref<1x4x18x18xf32, #tpu.memory_space<vmem>>, vector<1x1x16x16xf32>
    %43 = vector.shape_cast %42 : vector<1x1x16x16xf32> to vector<16x16xf32>
    %c224 = arith.constant 224 : index
    %c0_72 = arith.constant 0 : index
    %44 = vector.load %arg7[%c224, %c0_72] : memref<576x16xf32, #tpu.memory_space<vmem>>, vector<16x16xf32>
    tpu.vector_store %arg7[%c224, %c0_72], %43 {strides = array<i32>} : memref<576x16xf32, #tpu.memory_space<vmem>>, vector<16x16xf32>,
    %c0_73 = arith.constant 0 : index
    %c1_74 = arith.constant 1 : index
    %c2_75 = arith.constant 2 : index
    %c0_76 = arith.constant 0 : index
    %45 = vector.load %arg1[%c0_73, %c1_74, %c2_75, %c0_76] : memref<1x4x18x18xf32, #tpu.memory_space<vmem>>, vector<1x1x16x16xf32>
    %46 = vector.shape_cast %45 : vector<1x1x16x16xf32> to vector<16x16xf32>
    %c240 = arith.constant 240 : index
    %c0_77 = arith.constant 0 : index
    %47 = vector.load %arg7[%c240, %c0_77] : memref<576x16xf32, #tpu.memory_space<vmem>>, vector<16x16xf32>
    tpu.vector_store %arg7[%c240, %c0_77], %46 {strides = array<i32>} : memref<576x16xf32, #tpu.memory_space<vmem>>, vector<16x16xf32>,
    %c0_78 = arith.constant 0 : index
    %c1_79 = arith.constant 1 : index
    %c2_80 = arith.constant 2 : index
    %c1_81 = arith.constant 1 : index
    %48 = vector.load %arg1[%c0_78, %c1_79, %c2_80, %c1_81] : memref<1x4x18x18xf32, #tpu.memory_space<vmem>>, vector<1x1x16x16xf32>
    %49 = vector.shape_cast %48 : vector<1x1x16x16xf32> to vector<16x16xf32>
    %c256 = arith.constant 256 : index
    %c0_82 = arith.constant 0 : index
    %50 = vector.load %arg7[%c256, %c0_82] : memref<576x16xf32, #tpu.memory_space<vmem>>, vector<16x16xf32>
    tpu.vector_store %arg7[%c256, %c0_82], %49 {strides = array<i32>} : memref<576x16xf32, #tpu.memory_space<vmem>>, vector<16x16xf32>,
    %c0_83 = arith.constant 0 : index
    %c1_84 = arith.constant 1 : index
    %c2_85 = arith.constant 2 : index
    %c2_86 = arith.constant 2 : index
    %51 = vector.load %arg1[%c0_83, %c1_84, %c2_85, %c2_86] : memref<1x4x18x18xf32, #tpu.memory_space<vmem>>, vector<1x1x16x16xf32>
    %52 = vector.shape_cast %51 : vector<1x1x16x16xf32> to vector<16x16xf32>
    %c272 = arith.constant 272 : index
    %c0_87 = arith.constant 0 : index
    %53 = vector.load %arg7[%c272, %c0_87] : memref<576x16xf32, #tpu.memory_space<vmem>>, vector<16x16xf32>
    tpu.vector_store %arg7[%c272, %c0_87], %52 {strides = array<i32>} : memref<576x16xf32, #tpu.memory_space<vmem>>, vector<16x16xf32>,
    %c0_88 = arith.constant 0 : index
    %c2_89 = arith.constant 2 : index
    %c0_90 = arith.constant 0 : index
    %c0_91 = arith.constant 0 : index
    %54 = vector.load %arg1[%c0_88, %c2_89, %c0_90, %c0_91] : memref<1x4x18x18xf32, #tpu.memory_space<vmem>>, vector<1x1x16x16xf32>
    %55 = vector.shape_cast %54 : vector<1x1x16x16xf32> to vector<16x16xf32>
    %c288 = arith.constant 288 : index
    %c0_92 = arith.constant 0 : index
    %56 = vector.load %arg7[%c288, %c0_92] : memref<576x16xf32, #tpu.memory_space<vmem>>, vector<16x16xf32>
    tpu.vector_store %arg7[%c288, %c0_92], %55 {strides = array<i32>} : memref<576x16xf32, #tpu.memory_space<vmem>>, vector<16x16xf32>,
    %c0_93 = arith.constant 0 : index
    %c2_94 = arith.constant 2 : index
    %c0_95 = arith.constant 0 : index
    %c1_96 = arith.constant 1 : index
    %57 = vector.load %arg1[%c0_93, %c2_94, %c0_95, %c1_96] : memref<1x4x18x18xf32, #tpu.memory_space<vmem>>, vector<1x1x16x16xf32>
    %58 = vector.shape_cast %57 : vector<1x1x16x16xf32> to vector<16x16xf32>
    %c304 = arith.constant 304 : index
    %c0_97 = arith.constant 0 : index
    %59 = vector.load %arg7[%c304, %c0_97] : memref<576x16xf32, #tpu.memory_space<vmem>>, vector<16x16xf32>
    tpu.vector_store %arg7[%c304, %c0_97], %58 {strides = array<i32>} : memref<576x16xf32, #tpu.memory_space<vmem>>, vector<16x16xf32>,
    %c0_98 = arith.constant 0 : index
    %c2_99 = arith.constant 2 : index
    %c0_100 = arith.constant 0 : index
    %c2_101 = arith.constant 2 : index
    %60 = vector.load %arg1[%c0_98, %c2_99, %c0_100, %c2_101] : memref<1x4x18x18xf32, #tpu.memory_space<vmem>>, vector<1x1x16x16xf32>
    %61 = vector.shape_cast %60 : vector<1x1x16x16xf32> to vector<16x16xf32>
    %c320 = arith.constant 320 : index
    %c0_102 = arith.constant 0 : index
    %62 = vector.load %arg7[%c320, %c0_102] : memref<576x16xf32, #tpu.memory_space<vmem>>, vector<16x16xf32>
    tpu.vector_store %arg7[%c320, %c0_102], %61 {strides = array<i32>} : memref<576x16xf32, #tpu.memory_space<vmem>>, vector<16x16xf32>,
    %c0_103 = arith.constant 0 : index
    %c2_104 = arith.constant 2 : index
    %c1_105 = arith.constant 1 : index
    %c0_106 = arith.constant 0 : index
    %63 = vector.load %arg1[%c0_103, %c2_104, %c1_105, %c0_106] : memref<1x4x18x18xf32, #tpu.memory_space<vmem>>, vector<1x1x16x16xf32>
    %64 = vector.shape_cast %63 : vector<1x1x16x16xf32> to vector<16x16xf32>
    %c336 = arith.constant 336 : index
    %c0_107 = arith.constant 0 : index
    %65 = vector.load %arg7[%c336, %c0_107] : memref<576x16xf32, #tpu.memory_space<vmem>>, vector<16x16xf32>
    tpu.vector_store %arg7[%c336, %c0_107], %64 {strides = array<i32>} : memref<576x16xf32, #tpu.memory_space<vmem>>, vector<16x16xf32>,
    %c0_108 = arith.constant 0 : index
    %c2_109 = arith.constant 2 : index
    %c1_110 = arith.constant 1 : index
    %c1_111 = arith.constant 1 : index
    %66 = vector.load %arg1[%c0_108, %c2_109, %c1_110, %c1_111] : memref<1x4x18x18xf32, #tpu.memory_space<vmem>>, vector<1x1x16x16xf32>
    %67 = vector.shape_cast %66 : vector<1x1x16x16xf32> to vector<16x16xf32>
    %c352 = arith.constant 352 : index
    %c0_112 = arith.constant 0 : index
    %68 = vector.load %arg7[%c352, %c0_112] : memref<576x16xf32, #tpu.memory_space<vmem>>, vector<16x16xf32>
    tpu.vector_store %arg7[%c352, %c0_112], %67 {strides = array<i32>} : memref<576x16xf32, #tpu.memory_space<vmem>>, vector<16x16xf32>,
    %c0_113 = arith.constant 0 : index
    %c2_114 = arith.constant 2 : index
    %c1_115 = arith.constant 1 : index
    %c2_116 = arith.constant 2 : index
    %69 = vector.load %arg1[%c0_113, %c2_114, %c1_115, %c2_116] : memref<1x4x18x18xf32, #tpu.memory_space<vmem>>, vector<1x1x16x16xf32>
    %70 = vector.shape_cast %69 : vector<1x1x16x16xf32> to vector<16x16xf32>
    %c368 = arith.constant 368 : index
    %c0_117 = arith.constant 0 : index
    %71 = vector.load %arg7[%c368, %c0_117] : memref<576x16xf32, #tpu.memory_space<vmem>>, vector<16x16xf32>
    tpu.vector_store %arg7[%c368, %c0_117], %70 {strides = array<i32>} : memref<576x16xf32, #tpu.memory_space<vmem>>, vector<16x16xf32>,
    %c0_118 = arith.constant 0 : index
    %c2_119 = arith.constant 2 : index
    %c2_120 = arith.constant 2 : index
    %c0_121 = arith.constant 0 : index
    %72 = vector.load %arg1[%c0_118, %c2_119, %c2_120, %c0_121] : memref<1x4x18x18xf32, #tpu.memory_space<vmem>>, vector<1x1x16x16xf32>
    %73 = vector.shape_cast %72 : vector<1x1x16x16xf32> to vector<16x16xf32>
    %c384 = arith.constant 384 : index
    %c0_122 = arith.constant 0 : index
    %74 = vector.load %arg7[%c384, %c0_122] : memref<576x16xf32, #tpu.memory_space<vmem>>, vector<16x16xf32>
    tpu.vector_store %arg7[%c384, %c0_122], %73 {strides = array<i32>} : memref<576x16xf32, #tpu.memory_space<vmem>>, vector<16x16xf32>,
    %c0_123 = arith.constant 0 : index
    %c2_124 = arith.constant 2 : index
    %c2_125 = arith.constant 2 : index
    %c1_126 = arith.constant 1 : index
    %75 = vector.load %arg1[%c0_123, %c2_124, %c2_125, %c1_126] : memref<1x4x18x18xf32, #tpu.memory_space<vmem>>, vector<1x1x16x16xf32>
    %76 = vector.shape_cast %75 : vector<1x1x16x16xf32> to vector<16x16xf32>
    %c400 = arith.constant 400 : index
    %c0_127 = arith.constant 0 : index
    %77 = vector.load %arg7[%c400, %c0_127] : memref<576x16xf32, #tpu.memory_space<vmem>>, vector<16x16xf32>
    tpu.vector_store %arg7[%c400, %c0_127], %76 {strides = array<i32>} : memref<576x16xf32, #tpu.memory_space<vmem>>, vector<16x16xf32>,
    %c0_128 = arith.constant 0 : index
    %c2_129 = arith.constant 2 : index
    %c2_130 = arith.constant 2 : index
    %c2_131 = arith.constant 2 : index
    %78 = vector.load %arg1[%c0_128, %c2_129, %c2_130, %c2_131] : memref<1x4x18x18xf32, #tpu.memory_space<vmem>>, vector<1x1x16x16xf32>
    %79 = vector.shape_cast %78 : vector<1x1x16x16xf32> to vector<16x16xf32>
    %c416 = arith.constant 416 : index
    %c0_132 = arith.constant 0 : index
    %80 = vector.load %arg7[%c416, %c0_132] : memref<576x16xf32, #tpu.memory_space<vmem>>, vector<16x16xf32>
    tpu.vector_store %arg7[%c416, %c0_132], %79 {strides = array<i32>} : memref<576x16xf32, #tpu.memory_space<vmem>>, vector<16x16xf32>,
    %c0_133 = arith.constant 0 : index
    %c3 = arith.constant 3 : index
    %c0_134 = arith.constant 0 : index
    %c0_135 = arith.constant 0 : index
    %81 = vector.load %arg1[%c0_133, %c3, %c0_134, %c0_135] : memref<1x4x18x18xf32, #tpu.memory_space<vmem>>, vector<1x1x16x16xf32>
    %82 = vector.shape_cast %81 : vector<1x1x16x16xf32> to vector<16x16xf32>
    %c432 = arith.constant 432 : index
    %c0_136 = arith.constant 0 : index
    %83 = vector.load %arg7[%c432, %c0_136] : memref<576x16xf32, #tpu.memory_space<vmem>>, vector<16x16xf32>
    tpu.vector_store %arg7[%c432, %c0_136], %82 {strides = array<i32>} : memref<576x16xf32, #tpu.memory_space<vmem>>, vector<16x16xf32>,
    %c0_137 = arith.constant 0 : index
    %c3_138 = arith.constant 3 : index
    %c0_139 = arith.constant 0 : index
    %c1_140 = arith.constant 1 : index
    %84 = vector.load %arg1[%c0_137, %c3_138, %c0_139, %c1_140] : memref<1x4x18x18xf32, #tpu.memory_space<vmem>>, vector<1x1x16x16xf32>
    %85 = vector.shape_cast %84 : vector<1x1x16x16xf32> to vector<16x16xf32>
    %c448 = arith.constant 448 : index
    %c0_141 = arith.constant 0 : index
    %86 = vector.load %arg7[%c448, %c0_141] : memref<576x16xf32, #tpu.memory_space<vmem>>, vector<16x16xf32>
    tpu.vector_store %arg7[%c448, %c0_141], %85 {strides = array<i32>} : memref<576x16xf32, #tpu.memory_space<vmem>>, vector<16x16xf32>,
    %c0_142 = arith.constant 0 : index
    %c3_143 = arith.constant 3 : index
    %c0_144 = arith.constant 0 : index
    %c2_145 = arith.constant 2 : index
    %87 = vector.load %arg1[%c0_142, %c3_143, %c0_144, %c2_145] : memref<1x4x18x18xf32, #tpu.memory_space<vmem>>, vector<1x1x16x16xf32>
    %88 = vector.shape_cast %87 : vector<1x1x16x16xf32> to vector<16x16xf32>
    %c464 = arith.constant 464 : index
    %c0_146 = arith.constant 0 : index
    %89 = vector.load %arg7[%c464, %c0_146] : memref<576x16xf32, #tpu.memory_space<vmem>>, vector<16x16xf32>
    tpu.vector_store %arg7[%c464, %c0_146], %88 {strides = array<i32>} : memref<576x16xf32, #tpu.memory_space<vmem>>, vector<16x16xf32>,
    %c0_147 = arith.constant 0 : index
    %c3_148 = arith.constant 3 : index
    %c1_149 = arith.constant 1 : index
    %c0_150 = arith.constant 0 : index
    %90 = vector.load %arg1[%c0_147, %c3_148, %c1_149, %c0_150] : memref<1x4x18x18xf32, #tpu.memory_space<vmem>>, vector<1x1x16x16xf32>
    %91 = vector.shape_cast %90 : vector<1x1x16x16xf32> to vector<16x16xf32>
    %c480 = arith.constant 480 : index
    %c0_151 = arith.constant 0 : index
    %92 = vector.load %arg7[%c480, %c0_151] : memref<576x16xf32, #tpu.memory_space<vmem>>, vector<16x16xf32>
    tpu.vector_store %arg7[%c480, %c0_151], %91 {strides = array<i32>} : memref<576x16xf32, #tpu.memory_space<vmem>>, vector<16x16xf32>,
    %c0_152 = arith.constant 0 : index
    %c3_153 = arith.constant 3 : index
    %c1_154 = arith.constant 1 : index
    %c1_155 = arith.constant 1 : index
    %93 = vector.load %arg1[%c0_152, %c3_153, %c1_154, %c1_155] : memref<1x4x18x18xf32, #tpu.memory_space<vmem>>, vector<1x1x16x16xf32>
    %94 = vector.shape_cast %93 : vector<1x1x16x16xf32> to vector<16x16xf32>
    %c496 = arith.constant 496 : index
    %c0_156 = arith.constant 0 : index
    %95 = vector.load %arg7[%c496, %c0_156] : memref<576x16xf32, #tpu.memory_space<vmem>>, vector<16x16xf32>
    tpu.vector_store %arg7[%c496, %c0_156], %94 {strides = array<i32>} : memref<576x16xf32, #tpu.memory_space<vmem>>, vector<16x16xf32>,
    %c0_157 = arith.constant 0 : index
    %c3_158 = arith.constant 3 : index
    %c1_159 = arith.constant 1 : index
    %c2_160 = arith.constant 2 : index
    %96 = vector.load %arg1[%c0_157, %c3_158, %c1_159, %c2_160] : memref<1x4x18x18xf32, #tpu.memory_space<vmem>>, vector<1x1x16x16xf32>
    %97 = vector.shape_cast %96 : vector<1x1x16x16xf32> to vector<16x16xf32>
    %c512 = arith.constant 512 : index
    %c0_161 = arith.constant 0 : index
    %98 = vector.load %arg7[%c512, %c0_161] : memref<576x16xf32, #tpu.memory_space<vmem>>, vector<16x16xf32>
    tpu.vector_store %arg7[%c512, %c0_161], %97 {strides = array<i32>} : memref<576x16xf32, #tpu.memory_space<vmem>>, vector<16x16xf32>,
    %c0_162 = arith.constant 0 : index
    %c3_163 = arith.constant 3 : index
    %c2_164 = arith.constant 2 : index
    %c0_165 = arith.constant 0 : index
    %99 = vector.load %arg1[%c0_162, %c3_163, %c2_164, %c0_165] : memref<1x4x18x18xf32, #tpu.memory_space<vmem>>, vector<1x1x16x16xf32>
    %100 = vector.shape_cast %99 : vector<1x1x16x16xf32> to vector<16x16xf32>
    %c528 = arith.constant 528 : index
    %c0_166 = arith.constant 0 : index
    %101 = vector.load %arg7[%c528, %c0_166] : memref<576x16xf32, #tpu.memory_space<vmem>>, vector<16x16xf32>
    tpu.vector_store %arg7[%c528, %c0_166], %100 {strides = array<i32>} : memref<576x16xf32, #tpu.memory_space<vmem>>, vector<16x16xf32>,
    %c0_167 = arith.constant 0 : index
    %c3_168 = arith.constant 3 : index
    %c2_169 = arith.constant 2 : index
    %c1_170 = arith.constant 1 : index
    %102 = vector.load %arg1[%c0_167, %c3_168, %c2_169, %c1_170] : memref<1x4x18x18xf32, #tpu.memory_space<vmem>>, vector<1x1x16x16xf32>
    %103 = vector.shape_cast %102 : vector<1x1x16x16xf32> to vector<16x16xf32>
    %c544 = arith.constant 544 : index
    %c0_171 = arith.constant 0 : index
    %104 = vector.load %arg7[%c544, %c0_171] : memref<576x16xf32, #tpu.memory_space<vmem>>, vector<16x16xf32>
    tpu.vector_store %arg7[%c544, %c0_171], %103 {strides = array<i32>} : memref<576x16xf32, #tpu.memory_space<vmem>>, vector<16x16xf32>,
    %c0_172 = arith.constant 0 : index
    %c3_173 = arith.constant 3 : index
    %c2_174 = arith.constant 2 : index
    %c2_175 = arith.constant 2 : index
    %105 = vector.load %arg1[%c0_172, %c3_173, %c2_174, %c2_175] : memref<1x4x18x18xf32, #tpu.memory_space<vmem>>, vector<1x1x16x16xf32>
    %106 = vector.shape_cast %105 : vector<1x1x16x16xf32> to vector<16x16xf32>
    %c560 = arith.constant 560 : index
    %c0_176 = arith.constant 0 : index
    %107 = vector.load %arg7[%c560, %c0_176] : memref<576x16xf32, #tpu.memory_space<vmem>>, vector<16x16xf32>
    tpu.vector_store %arg7[%c560, %c0_176], %106 {strides = array<i32>} : memref<576x16xf32, #tpu.memory_space<vmem>>, vector<16x16xf32>,
    %c0_177 = arith.constant 0 : index
    %c0_178 = arith.constant 0 : index
    %108 = vector.load %arg2[%c0_177, %c0_178] : memref<128x576xf32, #tpu.memory_space<vmem>>, vector<128x576xf32>
    %c0_179 = arith.constant 0 : index
    %c0_180 = arith.constant 0 : index
    %109 = vector.load %arg7[%c0_179, %c0_180] : memref<576x16xf32, #tpu.memory_space<vmem>>, vector<576x16xf32>
    %cst = arith.constant dense<0.000000e+00> : vector<128x16xf32>
    %110 = tpu.matmul %108, %109, %cst {dimension_numbers = #tpu.dot_dimension_numbers<[1], [0], [0], [1], [0, 0, 1, 1], [], []>} : vector<128x576xf32>, vector<576x16xf32>, vector<128x16xf32> -> vector<128x16xf32>
    %c0_181 = arith.constant 0 : index
    %c0_182 = arith.constant 0 : index
    %111 = vector.load %arg3[%c0_181, %c0_182] : memref<128x1xf32, #tpu.memory_space<vmem>>, vector<128x1xf32>
    %112 = vector.broadcast %111 : vector<128x1xf32> to vector<128x16xf32>
    %113 = arith.addf %110, %112 : vector<128x16xf32>
    %c0_183 = arith.constant 0 : index
    %c0_184 = arith.constant 0 : index
    %114 = vector.load %arg4[%c0_183, %c0_184] : memref<16x32xf32, #tpu.memory_space<vmem>>, vector<16x32xf32>
    %cst_185 = arith.constant dense<0.000000e+00> : vector<128x32xf32>
    %115 = tpu.matmul %113, %114, %cst_185 {dimension_numbers = #tpu.dot_dimension_numbers<[1], [0], [0], [1], [0, 0, 1, 1], [], []>} : vector<128x16xf32>, vector<16x32xf32>, vector<128x32xf32> -> vector<128x32xf32>
    %c0_186 = arith.constant 0 : index
    %c0_187 = arith.constant 0 : index
    %116 = vector.load %arg5[%c0_186, %c0_187] : memref<256x128xf32, #tpu.memory_space<vmem>>, vector<256x128xf32>
    %cst_188 = arith.constant dense<0.000000e+00> : vector<256x32xf32>
    %117 = tpu.matmul %116, %115, %cst_188 {dimension_numbers = #tpu.dot_dimension_numbers<[1], [0], [0], [1], [0, 0, 1, 1], [], []>} : vector<256x128xf32>, vector<128x32xf32>, vector<256x32xf32> -> vector<256x32xf32>
    %cst_189 = arith.constant 0.000000e+00 : f32
    %118 = vector.broadcast %cst_189 : f32 to vector<256x32xf32>
    %119 = arith.maximumf %117, %118 : vector<256x32xf32>
    %c0_190 = arith.constant 0 : index
    %c0_191 = arith.constant 0 : index
    %c0_192 = arith.constant 0 : index
    %120 = vector.load %arg6[%c0_190, %c0_191, %c0_192] : memref<1x256x32xf32, #tpu.memory_space<vmem>>, vector<1x256x32xf32>
    %121 = vector.shape_cast %120 : vector<1x256x32xf32> to vector<256x32xf32>
    %122 = vector.shape_cast %119 : vector<256x32xf32> to vector<1x256x32xf32>
    tpu.vector_store %arg6[%c0_190, %c0_191, %c0_192], %122 {strides = array<i32>} : memref<1x256x32xf32, #tpu.memory_space<vmem>>, vector<1x256x32xf32>,
    return
  }
  func.func @transform_0(%arg0: i32) -> (i32, i32, i32, i32) {
    %c0_i32 = arith.constant 0 : i32
    %c0_i32_0 = arith.constant 0 : i32
    %c0_i32_1 = arith.constant 0 : i32
    %c0_i32_2 = arith.constant 0 : i32
    return %arg0, %c0_i32, %c0_i32_0, %c0_i32_1 : i32, i32, i32, i32
  }
  func.func @transform_1(%arg0: i32) -> (i32, i32) {
    %c0_i32 = arith.constant 0 : i32
    %c0_i32_0 = arith.constant 0 : i32
    %c0_i32_1 = arith.constant 0 : i32
    return %c0_i32, %c0_i32_0 : i32, i32
  }
  func.func @transform_2(%arg0: i32) -> (i32, i32) {
    %c0_i32 = arith.constant 0 : i32
    %c0_i32_0 = arith.constant 0 : i32
    %c0_i32_1 = arith.constant 0 : i32
    return %c0_i32, %c0_i32_0 : i32, i32
  }
  func.func @transform_3(%arg0: i32) -> (i32, i32) {
    %c0_i32 = arith.constant 0 : i32
    %c0_i32_0 = arith.constant 0 : i32
    %c0_i32_1 = arith.constant 0 : i32
    return %c0_i32, %c0_i32_0 : i32, i32
  }
  func.func @transform_4(%arg0: i32) -> (i32, i32) {
    %c0_i32 = arith.constant 0 : i32
    %c0_i32_0 = arith.constant 0 : i32
    %c0_i32_1 = arith.constant 0 : i32
    return %c0_i32, %c0_i32_0 : i32, i32
  }
  func.func @transform_5(%arg0: i32) -> (i32, i32, i32) {
    %c0_i32 = arith.constant 0 : i32
    %c0_i32_0 = arith.constant 0 : i32
    %c0_i32_1 = arith.constant 0 : i32
    return %arg0, %c0_i32, %c0_i32_0 : i32, i32, i32
  }
}

</mosaic_0001>

<llo_original>
// kernel: tpu_custom_call.1
$region0: #{tpu_custom_call.1}
  #allocation0 [shape = 'u32[]', space=smem, size = 0x4, offset = 0x4, fixed_abs, tag = 'smem constant byte address 0x4 - core index']
  #allocation1 [shape = 'u32[144,128]{1,0:T(1,128)}', space=vmem, size = 0x12000, scoped, tag = 'internal scratch']
  #allocation2 [shape = 'f32[576,16]{1,0:T(8,128)}', space=vmem, size = 0x48000, scoped, tag = 'scratch operand']
  %s0 = inlined_call_operand.vmem [shape: f32[2,4,18,18], index: 0, kind: input, shape index: {}]
  %s1 = inlined_call_operand.vmem [shape: f32[128,576], index: 1, kind: input, shape index: {}]
  %s2 = inlined_call_operand.vmem [shape: f32[128,1], index: 2, kind: input, shape index: {}]
  %s3 = inlined_call_operand.vmem [shape: f32[16,32], index: 3, kind: input, shape index: {}]
  %s4 = inlined_call_operand.vmem [shape: f32[256,128], index: 4, kind: input, shape index: {}]
  %s5 = inlined_call_operand.vmem [shape: f32[2,256,32], index: 5, kind: output, shape index: {}]
  %s6 = sld [smem:[#allocation0]]
  $region53: #{tpu_custom_call.1} parent=0
    _
  %s8 = ssub.s32 1, %s6
  %s9 = scalar_select 0, %s8, %s6
  loop: start=0, step=1, limit=4
  $region2: #{tpu_custom_call.1} parent=0 // loop_pre_header
    _
  $region3: #{tpu_custom_call.1} parent=0 // loop_header
    %s11 = sphi 0, %s15
    %p12 = scmp.ge.s32.totalorder %s11, 4
    %s21 = sphi 0, %s23
    %s24 = sphi 0, %s21
    %s25 = sphi 0, %s24
    %s41 = sphi 0, %s25
    %s45 = sphi 0, %s45
    %s47 = sphi 0, %s45
    %s48 = sphi 0, %s47
    %s62 = sphi 0, %s48
    %s66 = sphi 0, %s66
    %s68 = sphi 0, %s66
    %s69 = sphi 0, %s68
    %s83 = sphi 0, %s69
    %s87 = sphi 0, %s87
    %s89 = sphi 0, %s87
    %s90 = sphi 0, %s89
    %s104 = sphi 0, %s90
    %s108 = sphi 0, %s108
    %s110 = sphi 0, %s108
    %s111 = sphi 0, %s110
    %s125 = sphi 0, %s111
    %s131 = sphi 0, %s133
    %s134 = sphi 0, %s131
    %s135 = sphi 0, %s134
    %s151 = sphi 0, %s135
  $region4: #{tpu_custom_call.1} parent=0 // loop_header_branch
    %14 = sbr.rel (%p12) target = $region8
  $region5: #{tpu_custom_call.1} parent=0 // loop_body
    %s16 = ssub.s32 %s11, 1
    %s17 = ssub.s32 %s11, 2
    %s18 = sadd.s32 %s11, 1
    %s19 = ssub.s32 %s11, %s18
    %p20 = scmp.eq.s32.totalorder %s19, 0
    %s22 = sadd.s32 %s21, 1
    %s23 = scalar_select %p20, %s21, %s22
    %p26 = pneg %p20
    %p27 = scmp.eq.s32.totalorder %s11, 1
    %p28 = por %p26, %p27
    %p29 = scmp.ne.s32.totalorder %s21, %s24
    %p30 = scmp.eq.s32.totalorder %s11, 0
    %p31 = por %p29, %p30
    %p32 = scmp.ne.s32.totalorder %s21, %s24
    %p33 = scmp.eq.s32.totalorder %s16, 1
    %p34 = por %p32, %p33
    %p35 = scmp.ne.s32.totalorder %s24, %s25
    %p36 = scmp.eq.s32.totalorder %s16, 0
    %p37 = por %p35, %p36
    %p38 = scmp.ne.s32.totalorder %s24, %s25
    %p39 = scmp.eq.s32.totalorder %s17, 1
    %p40 = por %p38, %p39
    %p42 = scmp.ne.s32.totalorder %s25, %s41
    %p43 = scmp.eq.s32.totalorder %s17, 0
    %p44 = por %p42, %p43
    %s46 = sadd.s32 %s45, 1
    %p49 = scmp.eq.s32.totalorder %s11, 1
    %p50 = scmp.ne.s32.totalorder %s45, %s47
    %p51 = scmp.eq.s32.totalorder %s11, 0
    %p52 = por %p50, %p51
    %p53 = scmp.ne.s32.totalorder %s45, %s47
    %p54 = scmp.eq.s32.totalorder %s16, 1
    %p55 = por %p53, %p54
    %p56 = scmp.ne.s32.totalorder %s47, %s48
    %p57 = scmp.eq.s32.totalorder %s16, 0
    %p58 = por %p56, %p57
    %p59 = scmp.ne.s32.totalorder %s47, %s48
    %p60 = scmp.eq.s32.totalorder %s17, 1
    %p61 = por %p59, %p60
    %p63 = scmp.ne.s32.totalorder %s48, %s62
    %p64 = scmp.eq.s32.totalorder %s17, 0
    %p65 = por %p63, %p64
    %s67 = sadd.s32 %s66, 1
    %p70 = scmp.eq.s32.totalorder %s11, 1
    %p71 = scmp.ne.s32.totalorder %s66, %s68
    %p72 = scmp.eq.s32.totalorder %s11, 0
    %p73 = por %p71, %p72
    %p74 = scmp.ne.s32.totalorder %s66, %s68
    %p75 = scmp.eq.s32.totalorder %s16, 1
    %p76 = por %p74, %p75
    %p77 = scmp.ne.s32.totalorder %s68, %s69
    %p78 = scmp.eq.s32.totalorder %s16, 0
    %p79 = por %p77, %p78
    %p80 = scmp.ne.s32.totalorder %s68, %s69
    %p81 = scmp.eq.s32.totalorder %s17, 1
    %p82 = por %p80, %p81
    %p84 = scmp.ne.s32.totalorder %s69, %s83
    %p85 = scmp.eq.s32.totalorder %s17, 0
    %p86 = por %p84, %p85
    %s88 = sadd.s32 %s87, 1
    %p91 = scmp.eq.s32.totalorder %s11, 1
    %p92 = scmp.ne.s32.totalorder %s87, %s89
    %p93 = scmp.eq.s32.totalorder %s11, 0
    %p94 = por %p92, %p93
    %p95 = scmp.ne.s32.totalorder %s87, %s89
    %p96 = scmp.eq.s32.totalorder %s16, 1
    %p97 = por %p95, %p96
    %p98 = scmp.ne.s32.totalorder %s89, %s90
    %p99 = scmp.eq.s32.totalorder %s16, 0
    %p100 = por %p98, %p99
    %p101 = scmp.ne.s32.totalorder %s89, %s90
    %p102 = scmp.eq.s32.totalorder %s17, 1
    %p103 = por %p101, %p102
    %p105 = scmp.ne.s32.totalorder %s90, %s104
    %p106 = scmp.eq.s32.totalorder %s17, 0
    %p107 = por %p105, %p106
    %s109 = sadd.s32 %s108, 1
    %p112 = scmp.eq.s32.totalorder %s11, 1
    %p113 = scmp.ne.s32.totalorder %s108, %s110
    %p114 = scmp.eq.s32.totalorder %s11, 0
    %p115 = por %p113, %p114
    %p116 = scmp.ne.s32.totalorder %s108, %s110
    %p117 = scmp.eq.s32.totalorder %s16, 1
    %p118 = por %p116, %p117
    %p119 = scmp.ne.s32.totalorder %s110, %s111
    %p120 = scmp.eq.s32.totalorder %s16, 0
    %p121 = por %p119, %p120
    %p122 = scmp.ne.s32.totalorder %s110, %s111
    %p123 = scmp.eq.s32.totalorder %s17, 1
    %p124 = por %p122, %p123
    %p126 = scmp.ne.s32.totalorder %s111, %s125
    %p127 = scmp.eq.s32.totalorder %s17, 0
    %p128 = por %p126, %p127
    %s129 = ssub.s32 %s11, %s18
    %p130 = scmp.eq.s32.totalorder %s129, 0
    %s132 = sadd.s32 %s131, 1
    %s133 = scalar_select %p130, %s131, %s132
    %p136 = pneg %p130
    %p137 = scmp.eq.s32.totalorder %s11, 1
    %p138 = por %p136, %p137
    %p139 = scmp.ne.s32.totalorder %s131, %s134
    %p140 = scmp.eq.s32.totalorder %s11, 0
    %p141 = por %p139, %p140
    %p142 = scmp.ne.s32.totalorder %s131, %s134
    %p143 = scmp.eq.s32.totalorder %s16, 1
    %p144 = por %p142, %p143
    %p145 = scmp.ne.s32.totalorder %s134, %s135
    %p146 = scmp.eq.s32.totalorder %s16, 0
    %p147 = por %p145, %p146
    %p148 = scmp.ne.s32.totalorder %s134, %s135
    %p149 = scmp.eq.s32.totalorder %s17, 1
    %p150 = por %p148, %p149
    %p152 = scmp.ne.s32.totalorder %s135, %s151
    %p153 = scmp.eq.s32.totalorder %s17, 0
    %p154 = por %p152, %p153
    %p155 = scmp.le.s32.totalorder 1, %s11
    %p156 = scmp.lt.s32.totalorder %s11, 3
    %p157 = pnand %p155, %p156
    %p158 = pneg %p157
    // Predicated region
    $region9: #{tpu_custom_call.1} parent=5 // pred_check
      _
    $region10: #{tpu_custom_call.1} parent=5 // pred_check_branch
      %160 = sbr.rel (%p157) target = $region12
    $region11: #{tpu_custom_call.1} parent=5 // pred_region
      %s161 = ssub.s32 %s11, 1
      // Predicated region
      $region13: #{tpu_custom_call.1} parent=11 // pred_check
        %p162 = pneg %p58
      $region14: #{tpu_custom_call.1} parent=11 // pred_check_branch
        %164 = sbr.rel (%p162) target = $region16
      $region15: #{tpu_custom_call.1} parent=11 // pred_region
        _
      $region16: #{tpu_custom_call.1} parent=11 // pred_fallthru
        _
      // Predicated region
      $region17: #{tpu_custom_call.1} parent=11 // pred_check
        %p165 = pneg %p79
      $region18: #{tpu_custom_call.1} parent=11 // pred_check_branch
        %167 = sbr.rel (%p165) target = $region20
      $region19: #{tpu_custom_call.1} parent=11 // pred_region
        _
      $region20: #{tpu_custom_call.1} parent=11 // pred_fallthru
        _
      // Predicated region
      $region21: #{tpu_custom_call.1} parent=11 // pred_check
        %p168 = pneg %p100
      $region22: #{tpu_custom_call.1} parent=11 // pred_check_branch
        %170 = sbr.rel (%p168) target = $region24
      $region23: #{tpu_custom_call.1} parent=11 // pred_region
        _
      $region24: #{tpu_custom_call.1} parent=11 // pred_fallthru
        _
      // Predicated region
      $region25: #{tpu_custom_call.1} parent=11 // pred_check
        %p171 = pneg %p121
      $region26: #{tpu_custom_call.1} parent=11 // pred_check_branch
        %173 = sbr.rel (%p171) target = $region28
      $region27: #{tpu_custom_call.1} parent=11 // pred_region
        _
      $region28: #{tpu_custom_call.1} parent=11 // pred_fallthru
        _
    $region12: #{tpu_custom_call.1} parent=5 // pred_fallthru
      _
    %p174 = scmp.lt.s32.totalorder %s11, 2
    // Predicated region
    $region29: #{tpu_custom_call.1} parent=5 // pred_check
      %p175 = pneg %p174
    $region30: #{tpu_custom_call.1} parent=5 // pred_check_branch
      %177 = sbr.rel (%p175) target = $region32
    $region31: #{tpu_custom_call.1} parent=5 // pred_region
      // Predicated region
      $region33: #{tpu_custom_call.1} parent=31 // pred_check
        %p178 = pneg %p31
      $region34: #{tpu_custom_call.1} parent=31 // pred_check_branch
        %180 = sbr.rel (%p178) target = $region36
      $region35: #{tpu_custom_call.1} parent=31 // pred_region
        %p181 = scmp.lt.s32.totalorder %s11, 1
        %s182 = scalar_select %p181, %s11, 1
        %s183 = smul.addr %s182, 12
        %s184 = smul.addr %s183, 8
        %s185 = scalar_lea.vmem %s0, %s184
      $region36: #{tpu_custom_call.1} parent=31 // pred_fallthru
        _
    $region32: #{tpu_custom_call.1} parent=5 // pred_fallthru
      _
    %p186 = scmp.le.s32.totalorder 1, %s11
    %p187 = scmp.lt.s32.totalorder %s11, 3
    %p188 = pnand %p186, %p187
    %p189 = pneg %p188
    // Predicated region
    $region37: #{tpu_custom_call.1} parent=5 // pred_check
      _
    $region38: #{tpu_custom_call.1} parent=5 // pred_check_branch
      %191 = sbr.rel (%p188) target = $region40
    $region39: #{tpu_custom_call.1} parent=5 // pred_region
      %s192 = ssub.s32 %s11, 1
      %p193 = scmp.lt.s32.totalorder %s16, 1
      %s194 = scalar_select %p193, %s16, 1
      %s195 = smul.addr %s194, 12
      %s196 = smul.addr %s195, 8
      %s197 = scalar_lea.vmem %s0, %s196
      %p198 = pneg %p37
      %p199 = pneg %p34
      %p200 = pneg %p58
      %p201 = pneg %p55
      %p202 = pneg %p79
      %p203 = pneg %p76
      %p204 = pneg %p100
      %p205 = pneg %p97
      %p206 = pneg %p121
      %p207 = pneg %p118
      %p208 = pneg %p147
      %p209 = pneg %p144
      %p210 = scmp.lt.s32.totalorder %s16, 1
      %s211 = scalar_select %p210, %s16, 1
      %s212 = smul.addr %s211, 32
      %s213 = smul.addr %s212, 8
      %s214 = scalar_lea.vmem %s5, %s213
      %p215 = scmp.lt.s32.totalorder %s16, 1
      %s216 = scalar_select %p215, %s16, 1
      %s217 = smul.addr %s216, 12
      %s218 = smul.addr %s217, 8
      %s219 = scalar_lea.vmem %s0, %s218
      %p220 = scmp.lt.s32.totalorder %s16, 1
      %s221 = scalar_select %p220, %s16, 1
      %s222 = smul.addr %s221, 32
      %s223 = smul.addr %s222, 8
      %s224 = scalar_lea.vmem %s5, %s223
      %v225 = vld [vmem:[%s219] sm:$0xff]
      %v226 = vld [vmem:[%s219 + $0x8] sm:$0xff]
      %vm227 = vcmask 130048
      %228 = vst.msk [vmem:[#allocation2] sm:$0xff] %vm227, %v225
      %229 = vst.msk [vmem:[#allocation2 + $0x8] sm:$0xff] %vm227, %v226
      %v230 = vld [vmem:[%s219] sm:$0xff]
      %v231 = vld [vmem:[%s219 + $0x8] sm:$0xff]
      %234 = vrot.lane.b32.xlu0 %v230, 127
      %v235 = vpop.permute.xlu0 %234
      %236 = vrot.lane.b32.xlu0 %v231, 127
      %v237 = vpop.permute.xlu0 %236
      %240 = vst.msk [vmem:[#allocation2 + $0x10] sm:$0xff] %vm227, %v235
      %241 = vst.msk [vmem:[#allocation2 + $0x18] sm:$0xff] %vm227, %v237
      %v242 = vld [vmem:[%s219] sm:$0xff]
      %v243 = vld [vmem:[%s219 + $0x8] sm:$0xff]
      %246 = vrot.lane.b32.xlu0 %v242, 126
      %v247 = vpop.permute.xlu0 %246
      %248 = vrot.lane.b32.xlu0 %v243, 126
      %v249 = vpop.permute.xlu0 %248
      %252 = vst.msk [vmem:[#allocation2 + $0x20] sm:$0xff] %vm227, %v247
      %253 = vst.msk [vmem:[#allocation2 + $0x28] sm:$0xff] %vm227, %v249
      %v254 = vld [vmem:[%s219 + $0x1] sm:$0xff]
      %v255 = vld [vmem:[%s219 + $0x9] sm:$0xff]
      %256 = vst.msk [vmem:[#allocation2 + $0x30] sm:$0xff] %vm227, %v254
      %257 = vst.msk [vmem:[#allocation2 + $0x38] sm:$0xff] %vm227, %v255
      %v258 = vld [vmem:[%s219 + $0x1] sm:$0xff]
      %v259 = vld [vmem:[%s219 + $0x9] sm:$0xff]
      %262 = vrot.lane.b32.xlu0 %v258, 127
      %v263 = vpop.permute.xlu0 %262
      %264 = vrot.lane.b32.xlu0 %v259, 127
      %v265 = vpop.permute.xlu0 %264
      %268 = vst.msk [vmem:[#allocation2 + $0x40] sm:$0xff] %vm227, %v263
      %269 = vst.msk [vmem:[#allocation2 + $0x48] sm:$0xff] %vm227, %v265
      %v270 = vld [vmem:[%s219 + $0x1] sm:$0xff]
      %v271 = vld [vmem:[%s219 + $0x9] sm:$0xff]
      %274 = vrot.lane.b32.xlu0 %v270, 126
      %v275 = vpop.permute.xlu0 %274
      %276 = vrot.lane.b32.xlu0 %v271, 126
      %v277 = vpop.permute.xlu0 %276
      %280 = vst.msk [vmem:[#allocation2 + $0x50] sm:$0xff] %vm227, %v275
      %281 = vst.msk [vmem:[#allocation2 + $0x58] sm:$0xff] %vm227, %v277
      %v282 = vld [vmem:[%s219 + $0x2] sm:$0xff]
      %v283 = vld [vmem:[%s219 + $0xa] sm:$0xff]
      %284 = vst.msk [vmem:[#allocation2 + $0x60] sm:$0xff] %vm227, %v282
      %285 = vst.msk [vmem:[#allocation2 + $0x68] sm:$0xff] %vm227, %v283
      %v286 = vld [vmem:[%s219 + $0x2] sm:$0xff]
      %v287 = vld [vmem:[%s219 + $0xa] sm:$0xff]
      %290 = vrot.lane.b32.xlu0 %v286, 127
      %v291 = vpop.permute.xlu0 %290
      %292 = vrot.lane.b32.xlu0 %v287, 127
      %v293 = vpop.permute.xlu0 %292
      %296 = vst.msk [vmem:[#allocation2 + $0x70] sm:$0xff] %vm227, %v291
      %297 = vst.msk [vmem:[#allocation2 + $0x78] sm:$0xff] %vm227, %v293
      %v298 = vld [vmem:[%s219 + $0x2] sm:$0xff]
      %v299 = vld [vmem:[%s219 + $0xa] sm:$0xff]
      %302 = vrot.lane.b32.xlu0 %v298, 126
      %v303 = vpop.permute.xlu0 %302
      %304 = vrot.lane.b32.xlu0 %v299, 126
      %v305 = vpop.permute.xlu0 %304
      %308 = vst.msk [vmem:[#allocation2 + $0x80] sm:$0xff] %vm227, %v303
      %309 = vst.msk [vmem:[#allocation2 + $0x88] sm:$0xff] %vm227, %v305
      %s310 = scalar_lea.vmem %s219, 24
      %v311 = vld [vmem:[%s310] sm:$0xff]
      %v312 = vld [vmem:[%s310 + $0x8] sm:$0xff]
      %313 = vst.msk [vmem:[#allocation2 + $0x90] sm:$0xff] %vm227, %v311
      %314 = vst.msk [vmem:[#allocation2 + $0x98] sm:$0xff] %vm227, %v312
      %v315 = vld [vmem:[%s310] sm:$0xff]
      %v316 = vld [vmem:[%s310 + $0x8] sm:$0xff]
      %319 = vrot.lane.b32.xlu0 %v315, 127
      %v320 = vpop.permute.xlu0 %319
      %321 = vrot.lane.b32.xlu0 %v316, 127
      %v322 = vpop.permute.xlu0 %321
      %325 = vst.msk [vmem:[#allocation2 + $0xa0] sm:$0xff] %vm227, %v320
      %326 = vst.msk [vmem:[#allocation2 + $0xa8] sm:$0xff] %vm227, %v322
      %v327 = vld [vmem:[%s310] sm:$0xff]
      %v328 = vld [vmem:[%s310 + $0x8] sm:$0xff]
      %331 = vrot.lane.b32.xlu0 %v327, 126
      %v332 = vpop.permute.xlu0 %331
      %333 = vrot.lane.b32.xlu0 %v328, 126
      %v334 = vpop.permute.xlu0 %333
      %337 = vst.msk [vmem:[#allocation2 + $0xb0] sm:$0xff] %vm227, %v332
      %338 = vst.msk [vmem:[#allocation2 + $0xb8] sm:$0xff] %vm227, %v334
      %v339 = vld [vmem:[%s310 + $0x1] sm:$0xff]
      %v340 = vld [vmem:[%s310 + $0x9] sm:$0xff]
      %341 = vst.msk [vmem:[#allocation2 + $0xc0] sm:$0xff] %vm227, %v339
      %342 = vst.msk [vmem:[#allocation2 + $0xc8] sm:$0xff] %vm227, %v340
      %v343 = vld [vmem:[%s310 + $0x1] sm:$0xff]
      %v344 = vld [vmem:[%s310 + $0x9] sm:$0xff]
      %347 = vrot.lane.b32.xlu0 %v343, 127
      %v348 = vpop.permute.xlu0 %347
      %349 = vrot.lane.b32.xlu0 %v344, 127
      %v350 = vpop.permute.xlu0 %349
      %353 = vst.msk [vmem:[#allocation2 + $0xd0] sm:$0xff] %vm227, %v348
      %354 = vst.msk [vmem:[#allocation2 + $0xd8] sm:$0xff] %vm227, %v350
      %v355 = vld [vmem:[%s310 + $0x1] sm:$0xff]
      %v356 = vld [vmem:[%s310 + $0x9] sm:$0xff]
      %359 = vrot.lane.b32.xlu0 %v355, 126
      %v360 = vpop.permute.xlu0 %359
      %361 = vrot.lane.b32.xlu0 %v356, 126
      %v362 = vpop.permute.xlu0 %361
      %365 = vst.msk [vmem:[#allocation2 + $0xe0] sm:$0xff] %vm227, %v360
      %366 = vst.msk [vmem:[#allocation2 + $0xe8] sm:$0xff] %vm227, %v362
      %v367 = vld [vmem:[%s310 + $0x2] sm:$0xff]
      %v368 = vld [vmem:[%s310 + $0xa] sm:$0xff]
      %369 = vst.msk [vmem:[#allocation2 + $0xf0] sm:$0xff] %vm227, %v367
      %370 = vst.msk [vmem:[#allocation2 + $0xf8] sm:$0xff] %vm227, %v368
      %v371 = vld [vmem:[%s310 + $0x2] sm:$0xff]
      %v372 = vld [vmem:[%s310 + $0xa] sm:$0xff]
      %375 = vrot.lane.b32.xlu0 %v371, 127
      %v376 = vpop.permute.xlu0 %375
      %377 = vrot.lane.b32.xlu0 %v372, 127
      %v378 = vpop.permute.xlu0 %377
      %381 = vst.msk [vmem:[#allocation2 + $0x100] sm:$0xff] %vm227, %v376
      %382 = vst.msk [vmem:[#allocation2 + $0x108] sm:$0xff] %vm227, %v378
      %v383 = vld [vmem:[%s310 + $0x2] sm:$0xff]
      %v384 = vld [vmem:[%s310 + $0xa] sm:$0xff]
      %387 = vrot.lane.b32.xlu0 %v383, 126
      %v388 = vpop.permute.xlu0 %387
      %389 = vrot.lane.b32.xlu0 %v384, 126
      %v390 = vpop.permute.xlu0 %389
      %393 = vst.msk [vmem:[#allocation2 + $0x110] sm:$0xff] %vm227, %v388
      %394 = vst.msk [vmem:[#allocation2 + $0x118] sm:$0xff] %vm227, %v390
      %s395 = scalar_lea.vmem %s219, 48
      %v396 = vld [vmem:[%s395] sm:$0xff]
      %v397 = vld [vmem:[%s395 + $0x8] sm:$0xff]
      %398 = vst.msk [vmem:[#allocation2 + $0x120] sm:$0xff] %vm227, %v396
      %399 = vst.msk [vmem:[#allocation2 + $0x128] sm:$0xff] %vm227, %v397
      %v400 = vld [vmem:[%s395] sm:$0xff]
      %v401 = vld [vmem:[%s395 + $0x8] sm:$0xff]
      %404 = vrot.lane.b32.xlu0 %v400, 127
      %v405 = vpop.permute.xlu0 %404
      %406 = vrot.lane.b32.xlu0 %v401, 127
      %v407 = vpop.permute.xlu0 %406
      %410 = vst.msk [vmem:[#allocation2 + $0x130] sm:$0xff] %vm227, %v405
      %411 = vst.msk [vmem:[#allocation2 + $0x138] sm:$0xff] %vm227, %v407
      %v412 = vld [vmem:[%s395] sm:$0xff]
      %v413 = vld [vmem:[%s395 + $0x8] sm:$0xff]
      %416 = vrot.lane.b32.xlu0 %v412, 126
      %v417 = vpop.permute.xlu0 %416
      %418 = vrot.lane.b32.xlu0 %v413, 126
      %v419 = vpop.permute.xlu0 %418
      %422 = vst.msk [vmem:[#allocation2 + $0x140] sm:$0xff] %vm227, %v417
      %423 = vst.msk [vmem:[#allocation2 + $0x148] sm:$0xff] %vm227, %v419
      %v424 = vld [vmem:[%s395 + $0x1] sm:$0xff]
      %v425 = vld [vmem:[%s395 + $0x9] sm:$0xff]
      %426 = vst.msk [vmem:[#allocation2 + $0x150] sm:$0xff] %vm227, %v424
      %427 = vst.msk [vmem:[#allocation2 + $0x158] sm:$0xff] %vm227, %v425
      %v428 = vld [vmem:[%s395 + $0x1] sm:$0xff]
      %v429 = vld [vmem:[%s395 + $0x9] sm:$0xff]
      %432 = vrot.lane.b32.xlu0 %v428, 127
      %v433 = vpop.permute.xlu0 %432
      %434 = vrot.lane.b32.xlu0 %v429, 127
      %v435 = vpop.permute.xlu0 %434
      %438 = vst.msk [vmem:[#allocation2 + $0x160] sm:$0xff] %vm227, %v433
      %439 = vst.msk [vmem:[#allocation2 + $0x168] sm:$0xff] %vm227, %v435
      %v440 = vld [vmem:[%s395 + $0x1] sm:$0xff]
      %v441 = vld [vmem:[%s395 + $0x9] sm:$0xff]
      %444 = vrot.lane.b32.xlu0 %v440, 126
      %v445 = vpop.permute.xlu0 %444
      %446 = vrot.lane.b32.xlu0 %v441, 126
      %v447 = vpop.permute.xlu0 %446
      %450 = vst.msk [vmem:[#allocation2 + $0x170] sm:$0xff] %vm227, %v445
      %451 = vst.msk [vmem:[#allocation2 + $0x178] sm:$0xff] %vm227, %v447
      %v452 = vld [vmem:[%s395 + $0x2] sm:$0xff]
      %v453 = vld [vmem:[%s395 + $0xa] sm:$0xff]
      %454 = vst.msk [vmem:[#allocation2 + $0x180] sm:$0xff] %vm227, %v452
      %455 = vst.msk [vmem:[#allocation2 + $0x188] sm:$0xff] %vm227, %v453
      %v456 = vld [vmem:[%s395 + $0x2] sm:$0xff]
      %v457 = vld [vmem:[%s395 + $0xa] sm:$0xff]
      %460 = vrot.lane.b32.xlu0 %v456, 127
      %v461 = vpop.permute.xlu0 %460
      %462 = vrot.lane.b32.xlu0 %v457, 127
      %v463 = vpop.permute.xlu0 %462
      %466 = vst.msk [vmem:[#allocation2 + $0x190] sm:$0xff] %vm227, %v461
      %467 = vst.msk [vmem:[#allocation2 + $0x198] sm:$0xff] %vm227, %v463
      %v468 = vld [vmem:[%s395 + $0x2] sm:$0xff]
      %v469 = vld [vmem:[%s395 + $0xa] sm:$0xff]
      %472 = vrot.lane.b32.xlu0 %v468, 126
      %v473 = vpop.permute.xlu0 %472
      %474 = vrot.lane.b32.xlu0 %v469, 126
      %v475 = vpop.permute.xlu0 %474
      %478 = vst.msk [vmem:[#allocation2 + $0x1a0] sm:$0xff] %vm227, %v473
      %479 = vst.msk [vmem:[#allocation2 + $0x1a8] sm:$0xff] %vm227, %v475
      %s480 = scalar_lea.vmem %s219, 72
      %v481 = vld [vmem:[%s480] sm:$0xff]
      %v482 = vld [vmem:[%s480 + $0x8] sm:$0xff]
      %483 = vst.msk [vmem:[#allocation2 + $0x1b0] sm:$0xff] %vm227, %v481
      %484 = vst.msk [vmem:[#allocation2 + $0x1b8] sm:$0xff] %vm227, %v482
      %v485 = vld [vmem:[%s480] sm:$0xff]
      %v486 = vld [vmem:[%s480 + $0x8] sm:$0xff]
      %489 = vrot.lane.b32.xlu0 %v485, 127
      %v490 = vpop.permute.xlu0 %489
      %491 = vrot.lane.b32.xlu0 %v486, 127
      %v492 = vpop.permute.xlu0 %491
      %495 = vst.msk [vmem:[#allocation2 + $0x1c0] sm:$0xff] %vm227, %v490
      %496 = vst.msk [vmem:[#allocation2 + $0x1c8] sm:$0xff] %vm227, %v492
      %v497 = vld [vmem:[%s480] sm:$0xff]
      %v498 = vld [vmem:[%s480 + $0x8] sm:$0xff]
      %501 = vrot.lane.b32.xlu0 %v497, 126
      %v502 = vpop.permute.xlu0 %501
      %503 = vrot.lane.b32.xlu0 %v498, 126
      %v504 = vpop.permute.xlu0 %503
      %507 = vst.msk [vmem:[#allocation2 + $0x1d0] sm:$0xff] %vm227, %v502
      %508 = vst.msk [vmem:[#allocation2 + $0x1d8] sm:$0xff] %vm227, %v504
      %v509 = vld [vmem:[%s480 + $0x1] sm:$0xff]
      %v510 = vld [vmem:[%s480 + $0x9] sm:$0xff]
      %511 = vst.msk [vmem:[#allocation2 + $0x1e0] sm:$0xff] %vm227, %v509
      %512 = vst.msk [vmem:[#allocation2 + $0x1e8] sm:$0xff] %vm227, %v510
      %v513 = vld [vmem:[%s480 + $0x1] sm:$0xff]
      %v514 = vld [vmem:[%s480 + $0x9] sm:$0xff]
      %517 = vrot.lane.b32.xlu0 %v513, 127
      %v518 = vpop.permute.xlu0 %517
      %519 = vrot.lane.b32.xlu0 %v514, 127
      %v520 = vpop.permute.xlu0 %519
      %523 = vst.msk [vmem:[#allocation2 + $0x1f0] sm:$0xff] %vm227, %v518
      %524 = vst.msk [vmem:[#allocation2 + $0x1f8] sm:$0xff] %vm227, %v520
      %v525 = vld [vmem:[%s480 + $0x1] sm:$0xff]
      %v526 = vld [vmem:[%s480 + $0x9] sm:$0xff]
      %529 = vrot.lane.b32.xlu0 %v525, 126
      %v530 = vpop.permute.xlu0 %529
      %531 = vrot.lane.b32.xlu0 %v526, 126
      %v532 = vpop.permute.xlu0 %531
      %535 = vst.msk [vmem:[#allocation2 + $0x200] sm:$0xff] %vm227, %v530
      %536 = vst.msk [vmem:[#allocation2 + $0x208] sm:$0xff] %vm227, %v532
      %v537 = vld [vmem:[%s480 + $0x2] sm:$0xff]
      %v538 = vld [vmem:[%s480 + $0xa] sm:$0xff]
      %539 = vst.msk [vmem:[#allocation2 + $0x210] sm:$0xff] %vm227, %v537
      %540 = vst.msk [vmem:[#allocation2 + $0x218] sm:$0xff] %vm227, %v538
      %v541 = vld [vmem:[%s480 + $0x2] sm:$0xff]
      %v542 = vld [vmem:[%s480 + $0xa] sm:$0xff]
      %545 = vrot.lane.b32.xlu0 %v541, 127
      %v546 = vpop.permute.xlu0 %545
      %547 = vrot.lane.b32.xlu0 %v542, 127
      %v548 = vpop.permute.xlu0 %547
      %551 = vst.msk [vmem:[#allocation2 + $0x220] sm:$0xff] %vm227, %v546
      %552 = vst.msk [vmem:[#allocation2 + $0x228] sm:$0xff] %vm227, %v548
      %v553 = vld [vmem:[%s480 + $0x2] sm:$0xff]
      %v554 = vld [vmem:[%s480 + $0xa] sm:$0xff]
      %557 = vrot.lane.b32.xlu0 %v553, 126
      %v558 = vpop.permute.xlu0 %557
      %559 = vrot.lane.b32.xlu0 %v554, 126
      %v560 = vpop.permute.xlu0 %559
      %563 = vst.msk [vmem:[#allocation2 + $0x230] sm:$0xff] %vm227, %v558
      %564 = vst.msk [vmem:[#allocation2 + $0x238] sm:$0xff] %vm227, %v560
      %v565 = vld [vmem:[%s1] sm:$0xff]
      %v566 = vld [vmem:[%s1 + $0x8] sm:$0xff]
      %v567 = vld [vmem:[%s1 + $0x10] sm:$0xff]
      %v568 = vld [vmem:[%s1 + $0x18] sm:$0xff]
      %v569 = vld [vmem:[%s1 + $0x20] sm:$0xff]
      %v570 = vld [vmem:[%s1 + $0x28] sm:$0xff]
      %v571 = vld [vmem:[%s1 + $0x30] sm:$0xff]
      %v572 = vld [vmem:[%s1 + $0x38] sm:$0xff]
      %v573 = vld [vmem:[%s1 + $0x40] sm:$0xff]
      %v574 = vld [vmem:[%s1 + $0x48] sm:$0xff]
      %v575 = vld [vmem:[%s1 + $0x50] sm:$0xff]
      %v576 = vld [vmem:[%s1 + $0x58] sm:$0xff]
      %v577 = vld [vmem:[%s1 + $0x60] sm:$0xff]
      %v578 = vld [vmem:[%s1 + $0x68] sm:$0xff]
      %v579 = vld [vmem:[%s1 + $0x70] sm:$0xff]
      %v580 = vld [vmem:[%s1 + $0x78] sm:$0xff]
      %v581 = vld [vmem:[%s1 + $0x80] sm:$0xff]
      %v582 = vld [vmem:[%s1 + $0x88] sm:$0xff]
      %v583 = vld [vmem:[%s1 + $0x90] sm:$0xff]
      %v584 = vld [vmem:[%s1 + $0x98] sm:$0xff]
      %v585 = vld [vmem:[%s1 + $0xa0] sm:$0xff]
      %v586 = vld [vmem:[%s1 + $0xa8] sm:$0xff]
      %v587 = vld [vmem:[%s1 + $0xb0] sm:$0xff]
      %v588 = vld [vmem:[%s1 + $0xb8] sm:$0xff]
      %v589 = vld [vmem:[%s1 + $0xc0] sm:$0xff]
      %v590 = vld [vmem:[%s1 + $0xc8] sm:$0xff]
      %v591 = vld [vmem:[%s1 + $0xd0] sm:$0xff]
      %v592 = vld [vmem:[%s1 + $0xd8] sm:$0xff]
      %v593 = vld [vmem:[%s1 + $0xe0] sm:$0xff]
      %v594 = vld [vmem:[%s1 + $0xe8] sm:$0xff]
      %v595 = vld [vmem:[%s1 + $0xf0] sm:$0xff]
      %v596 = vld [vmem:[%s1 + $0xf8] sm:$0xff]
      %v597 = vld [vmem:[%s1 + $0x100] sm:$0xff]
      %v598 = vld [vmem:[%s1 + $0x108] sm:$0xff]
      %v599 = vld [vmem:[%s1 + $0x110] sm:$0xff]
      %v600 = vld [vmem:[%s1 + $0x118] sm:$0xff]
      %v601 = vld [vmem:[%s1 + $0x120] sm:$0xff]
      %v602 = vld [vmem:[%s1 + $0x128] sm:$0xff]
      %v603 = vld [vmem:[%s1 + $0x130] sm:$0xff]
      %v604 = vld [vmem:[%s1 + $0x138] sm:$0xff]
      %v605 = vld [vmem:[%s1 + $0x140] sm:$0xff]
      %v606 = vld [vmem:[%s1 + $0x148] sm:$0xff]
      %v607 = vld [vmem:[%s1 + $0x150] sm:$0xff]
      %v608 = vld [vmem:[%s1 + $0x158] sm:$0xff]
      %v609 = vld [vmem:[%s1 + $0x160] sm:$0xff]
      %v610 = vld [vmem:[%s1 + $0x168] sm:$0xff]
      %v611 = vld [vmem:[%s1 + $0x170] sm:$0xff]
      %v612 = vld [vmem:[%s1 + $0x178] sm:$0xff]
      %v613 = vld [vmem:[%s1 + $0x180] sm:$0xff]
      %v614 = vld [vmem:[%s1 + $0x188] sm:$0xff]
      %v615 = vld [vmem:[%s1 + $0x190] sm:$0xff]
      %v616 = vld [vmem:[%s1 + $0x198] sm:$0xff]
      %v617 = vld [vmem:[%s1 + $0x1a0] sm:$0xff]
      %v618 = vld [vmem:[%s1 + $0x1a8] sm:$0xff]
      %v619 = vld [vmem:[%s1 + $0x1b0] sm:$0xff]
      %v620 = vld [vmem:[%s1 + $0x1b8] sm:$0xff]
      %v621 = vld [vmem:[%s1 + $0x1c0] sm:$0xff]
      %v622 = vld [vmem:[%s1 + $0x1c8] sm:$0xff]
      %v623 = vld [vmem:[%s1 + $0x1d0] sm:$0xff]
      %v624 = vld [vmem:[%s1 + $0x1d8] sm:$0xff]
      %v625 = vld [vmem:[%s1 + $0x1e0] sm:$0xff]
      %v626 = vld [vmem:[%s1 + $0x1e8] sm:$0xff]
      %v627 = vld [vmem:[%s1 + $0x1f0] sm:$0xff]
      %v628 = vld [vmem:[%s1 + $0x1f8] sm:$0xff]
      %v629 = vld [vmem:[%s1 + $0x200] sm:$0xff]
      %v630 = vld [vmem:[%s1 + $0x208] sm:$0xff]
      %v631 = vld [vmem:[%s1 + $0x210] sm:$0xff]
      %v632 = vld [vmem:[%s1 + $0x218] sm:$0xff]
      %v633 = vld [vmem:[%s1 + $0x220] sm:$0xff]
      %v634 = vld [vmem:[%s1 + $0x228] sm:$0xff]
      %v635 = vld [vmem:[%s1 + $0x230] sm:$0xff]
      %v636 = vld [vmem:[%s1 + $0x238] sm:$0xff]
      %v637 = vld [vmem:[%s1 + $0x240] sm:$0xff]
      %v638 = vld [vmem:[%s1 + $0x248] sm:$0xff]
      %v639 = vld [vmem:[%s1 + $0x250] sm:$0xff]
      %v640 = vld [vmem:[%s1 + $0x258] sm:$0xff]
      %v641 = vld [vmem:[%s1 + $0x260] sm:$0xff]
      %v642 = vld [vmem:[%s1 + $0x268] sm:$0xff]
      %v643 = vld [vmem:[%s1 + $0x270] sm:$0xff]
      %v644 = vld [vmem:[%s1 + $0x278] sm:$0xff]
      %v645 = vld [vmem:[#allocation2] sm:$0xff]
      %v646 = vld [vmem:[#allocation2 + $0x8] sm:$0xff]
      %v647 = vld [vmem:[#allocation2 + $0x10] sm:$0xff]
      %v648 = vld [vmem:[#allocation2 + $0x18] sm:$0xff]
      %v649 = vld [vmem:[#allocation2 + $0x20] sm:$0xff]
      %v650 = vld [vmem:[#allocation2 + $0x28] sm:$0xff]
      %v651 = vld [vmem:[#allocation2 + $0x30] sm:$0xff]
      %v652 = vld [vmem:[#allocation2 + $0x38] sm:$0xff]
      %v653 = vld [vmem:[#allocation2 + $0x40] sm:$0xff]
      %v654 = vld [vmem:[#allocation2 + $0x48] sm:$0xff]
      %v655 = vld [vmem:[#allocation2 + $0x50] sm:$0xff]
      %v656 = vld [vmem:[#allocation2 + $0x58] sm:$0xff]
      %v657 = vld [vmem:[#allocation2 + $0x60] sm:$0xff]
      %v658 = vld [vmem:[#allocation2 + $0x68] sm:$0xff]
      %v659 = vld [vmem:[#allocation2 + $0x70] sm:$0xff]
      %v660 = vld [vmem:[#allocation2 + $0x78] sm:$0xff]
      %v661 = vld [vmem:[#allocation2 + $0x80] sm:$0xff]
      %v662 = vld [vmem:[#allocation2 + $0x88] sm:$0xff]
      %v663 = vld [vmem:[#allocation2 + $0x90] sm:$0xff]
      %v664 = vld [vmem:[#allocation2 + $0x98] sm:$0xff]
      %v665 = vld [vmem:[#allocation2 + $0xa0] sm:$0xff]
      %v666 = vld [vmem:[#allocation2 + $0xa8] sm:$0xff]
      %v667 = vld [vmem:[#allocation2 + $0xb0] sm:$0xff]
      %v668 = vld [vmem:[#allocation2 + $0xb8] sm:$0xff]
      %v669 = vld [vmem:[#allocation2 + $0xc0] sm:$0xff]
      %v670 = vld [vmem:[#allocation2 + $0xc8] sm:$0xff]
      %v671 = vld [vmem:[#allocation2 + $0xd0] sm:$0xff]
      %v672 = vld [vmem:[#allocation2 + $0xd8] sm:$0xff]
      %v673 = vld [vmem:[#allocation2 + $0xe0] sm:$0xff]
      %v674 = vld [vmem:[#allocation2 + $0xe8] sm:$0xff]
      %v675 = vld [vmem:[#allocation2 + $0xf0] sm:$0xff]
      %v676 = vld [vmem:[#allocation2 + $0xf8] sm:$0xff]
      %v677 = vld [vmem:[#allocation2 + $0x100] sm:$0xff]
      %v678 = vld [vmem:[#allocation2 + $0x108] sm:$0xff]
      %v679 = vld [vmem:[#allocation2 + $0x110] sm:$0xff]
      %v680 = vld [vmem:[#allocation2 + $0x118] sm:$0xff]
      %v681 = vld [vmem:[#allocation2 + $0x120] sm:$0xff]
      %v682 = vld [vmem:[#allocation2 + $0x128] sm:$0xff]
      %v683 = vld [vmem:[#allocation2 + $0x130] sm:$0xff]
      %v684 = vld [vmem:[#allocation2 + $0x138] sm:$0xff]
      %v685 = vld [vmem:[#allocation2 + $0x140] sm:$0xff]
      %v686 = vld [vmem:[#allocation2 + $0x148] sm:$0xff]
      %v687 = vld [vmem:[#allocation2 + $0x150] sm:$0xff]
      %v688 = vld [vmem:[#allocation2 + $0x158] sm:$0xff]
      %v689 = vld [vmem:[#allocation2 + $0x160] sm:$0xff]
      %v690 = vld [vmem:[#allocation2 + $0x168] sm:$0xff]
      %v691 = vld [vmem:[#allocation2 + $0x170] sm:$0xff]
      %v692 = vld [vmem:[#allocation2 + $0x178] sm:$0xff]
      %v693 = vld [vmem:[#allocation2 + $0x180] sm:$0xff]
      %v694 = vld [vmem:[#allocation2 + $0x188] sm:$0xff]
      %v695 = vld [vmem:[#allocation2 + $0x190] sm:$0xff]
      %v696 = vld [vmem:[#allocation2 + $0x198] sm:$0xff]
      %v697 = vld [vmem:[#allocation2 + $0x1a0] sm:$0xff]
      %v698 = vld [vmem:[#allocation2 + $0x1a8] sm:$0xff]
      %v699 = vld [vmem:[#allocation2 + $0x1b0] sm:$0xff]
      %v700 = vld [vmem:[#allocation2 + $0x1b8] sm:$0xff]
      %v701 = vld [vmem:[#allocation2 + $0x1c0] sm:$0xff]
      %v702 = vld [vmem:[#allocation2 + $0x1c8] sm:$0xff]
      %v703 = vld [vmem:[#allocation2 + $0x1d0] sm:$0xff]
      %v704 = vld [vmem:[#allocation2 + $0x1d8] sm:$0xff]
      %v705 = vld [vmem:[#allocation2 + $0x1e0] sm:$0xff]
      %v706 = vld [vmem:[#allocation2 + $0x1e8] sm:$0xff]
      %v707 = vld [vmem:[#allocation2 + $0x1f0] sm:$0xff]
      %v708 = vld [vmem:[#allocation2 + $0x1f8] sm:$0xff]
      %v709 = vld [vmem:[#allocation2 + $0x200] sm:$0xff]
      %v710 = vld [vmem:[#allocation2 + $0x208] sm:$0xff]
      %v711 = vld [vmem:[#allocation2 + $0x210] sm:$0xff]
      %v712 = vld [vmem:[#allocation2 + $0x218] sm:$0xff]
      %v713 = vld [vmem:[#allocation2 + $0x220] sm:$0xff]
      %v714 = vld [vmem:[#allocation2 + $0x228] sm:$0xff]
      %v715 = vld [vmem:[#allocation2 + $0x230] sm:$0xff]
      %v716 = vld [vmem:[#allocation2 + $0x238] sm:$0xff]
      %v717 = vld [vmem:[%s2] sm:$0xff]
      %v718 = vld [vmem:[%s2 + $0x8] sm:$0xff]
      %v719 = vld [vmem:[%s2 + $0x10] sm:$0xff]
      %v720 = vld [vmem:[%s2 + $0x18] sm:$0xff]
      %v721 = vld [vmem:[%s2 + $0x20] sm:$0xff]
      %v722 = vld [vmem:[%s2 + $0x28] sm:$0xff]
      %v723 = vld [vmem:[%s2 + $0x30] sm:$0xff]
      %v724 = vld [vmem:[%s2 + $0x38] sm:$0xff]
      %v725 = vld [vmem:[%s2 + $0x40] sm:$0xff]
      %v726 = vld [vmem:[%s2 + $0x48] sm:$0xff]
      %v727 = vld [vmem:[%s2 + $0x50] sm:$0xff]
      %v728 = vld [vmem:[%s2 + $0x58] sm:$0xff]
      %v729 = vld [vmem:[%s2 + $0x60] sm:$0xff]
      %v730 = vld [vmem:[%s2 + $0x68] sm:$0xff]
      %v731 = vld [vmem:[%s2 + $0x70] sm:$0xff]
      %v732 = vld [vmem:[%s2 + $0x78] sm:$0xff]
      %734 = vset.pattern.permute.xlu0 0
      %735 = vperm.xlu0 %734, %v717
      %v736 = vpop.permute.xlu0 %735
      %739 = vset.pattern.permute.xlu0 0
      %740 = vperm.xlu0 %739, %v718
      %v741 = vpop.permute.xlu0 %740
      %744 = vset.pattern.permute.xlu0 0
      %745 = vperm.xlu0 %744, %v719
      %v746 = vpop.permute.xlu0 %745
      %749 = vset.pattern.permute.xlu0 0
      %750 = vperm.xlu0 %749, %v720
      %v751 = vpop.permute.xlu0 %750
      %754 = vset.pattern.permute.xlu0 0
      %755 = vperm.xlu0 %754, %v721
      %v756 = vpop.permute.xlu0 %755
      %759 = vset.pattern.permute.xlu0 0
      %760 = vperm.xlu0 %759, %v722
      %v761 = vpop.permute.xlu0 %760
      %764 = vset.pattern.permute.xlu0 0
      %765 = vperm.xlu0 %764, %v723
      %v766 = vpop.permute.xlu0 %765
      %769 = vset.pattern.permute.xlu0 0
      %770 = vperm.xlu0 %769, %v724
      %v771 = vpop.permute.xlu0 %770
      %774 = vset.pattern.permute.xlu0 0
      %775 = vperm.xlu0 %774, %v725
      %v776 = vpop.permute.xlu0 %775
      %779 = vset.pattern.permute.xlu0 0
      %780 = vperm.xlu0 %779, %v726
      %v781 = vpop.permute.xlu0 %780
      %784 = vset.pattern.permute.xlu0 0
      %785 = vperm.xlu0 %784, %v727
      %v786 = vpop.permute.xlu0 %785
      %789 = vset.pattern.permute.xlu0 0
      %790 = vperm.xlu0 %789, %v728
      %v791 = vpop.permute.xlu0 %790
      %794 = vset.pattern.permute.xlu0 0
      %795 = vperm.xlu0 %794, %v729
      %v796 = vpop.permute.xlu0 %795
      %799 = vset.pattern.permute.xlu0 0
      %800 = vperm.xlu0 %799, %v730
      %v801 = vpop.permute.xlu0 %800
      %804 = vset.pattern.permute.xlu0 0
      %805 = vperm.xlu0 %804, %v731
      %v806 = vpop.permute.xlu0 %805
      %809 = vset.pattern.permute.xlu0 0
      %810 = vperm.xlu0 %809, %v732
      %v811 = vpop.permute.xlu0 %810
      %vm813 = vcmask 523264
      %v815 = vsel %vm813, %v569, 0
      %v818 = vsel %vm813, %v574, 0
      %v821 = vsel %vm813, %v579, 0
      %v824 = vsel %vm813, %v584, 0
      %v827 = vsel %vm813, %v589, 0
      %v830 = vsel %vm813, %v594, 0
      %v833 = vsel %vm813, %v599, 0
      %v836 = vsel %vm813, %v604, 0
      %v839 = vsel %vm813, %v609, 0
      %v842 = vsel %vm813, %v614, 0
      %v845 = vsel %vm813, %v619, 0
      %v848 = vsel %vm813, %v624, 0
      %v851 = vsel %vm813, %v629, 0
      %v854 = vsel %vm813, %v634, 0
      %v857 = vsel %vm813, %v639, 0
      %v860 = vsel %vm813, %v644, 0
      %862 = vmatprep.subr.mxu0 0.0
      %863 = vmatpush1.msra.mxu0 %v660
      %864 = vmatprep.subr.mxu0 0.0
      %865 = vmatpush1.msra.mxu0 %v659
      %866 = vmatprep.subr.mxu0 0.0
      %867 = vmatpush1.msra.mxu0 %v658
      %868 = vmatprep.subr.mxu0 0.0
      %869 = vmatpush1.msra.mxu0 %v657
      %870 = vmatprep.subr.mxu0 0.0
      %871 = vmatpush1.msra.mxu0 %v656
      %872 = vmatprep.subr.mxu0 0.0
      %873 = vmatpush1.msra.mxu0 %v655
      %874 = vmatprep.subr.mxu0 0.0
      %875 = vmatpush1.msra.mxu0 %v654
      %876 = vmatprep.subr.mxu0 0.0
      %877 = vmatpush1.msra.mxu0 %v653
      %878 = vmatprep.subr.mxu0 0.0
      %879 = vmatpush1.msra.mxu0 %v652
      %880 = vmatprep.subr.mxu0 0.0
      %881 = vmatpush1.msra.mxu0 %v651
      %882 = vmatprep.subr.mxu0 0.0
      %883 = vmatpush1.msra.mxu0 %v650
      %884 = vmatprep.subr.mxu0 0.0
      %885 = vmatpush1.msra.mxu0 %v649
      %886 = vmatprep.subr.mxu0 0.0
      %887 = vmatpush1.msra.mxu0 %v648
      %888 = vmatprep.subr.mxu0 0.0
      %889 = vmatpush1.msra.mxu0 %v647
      %890 = vmatprep.subr.mxu0 0.0
      %891 = vmatpush1.msra.mxu0 %v646
      %892 = vmatprep.subr.mxu0 0.0
      %893 = vmatpush1.msra.mxu0 %v645
      %894 = vmatprep.subr.mxu0 0.0
      %895 = vmatpush2.msra.mxu0 %v676
      %896 = vmatprep.subr.mxu0 0.0
      %897 = vmatpush2.msra.mxu0 %v675
      %898 = vmatprep.subr.mxu0 0.0
      %899 = vmatpush2.msra.mxu0 %v674
      %900 = vmatprep.subr.mxu0 0.0
      %901 = vmatpush2.msra.mxu0 %v673
      %902 = vmatprep.subr.mxu0 0.0
      %903 = vmatpush2.msra.mxu0 %v672
      %904 = vmatprep.subr.mxu0 0.0
      %905 = vmatpush2.msra.mxu0 %v671
      %906 = vmatprep.subr.mxu0 0.0
      %907 = vmatpush2.msra.mxu0 %v670
      %908 = vmatprep.subr.mxu0 0.0
      %909 = vmatpush2.msra.mxu0 %v669
      %910 = vmatprep.subr.mxu0 0.0
      %911 = vmatpush2.msra.mxu0 %v668
      %912 = vmatprep.subr.mxu0 0.0
      %913 = vmatpush2.msra.mxu0 %v667
      %914 = vmatprep.subr.mxu0 0.0
      %915 = vmatpush2.msra.mxu0 %v666
      %916 = vmatprep.subr.mxu0 0.0
      %917 = vmatpush2.msra.mxu0 %v665
      %918 = vmatprep.subr.mxu0 0.0
      %919 = vmatpush2.msra.mxu0 %v664
      %920 = vmatprep.subr.mxu0 0.0
      %921 = vmatpush2.msra.mxu0 %v663
      %922 = vmatprep.subr.mxu0 0.0
      %923 = vmatpush2.msra.mxu0 %v662
      %924 = vmatprep.subr.mxu0 0.0
      %925 = vmatpush2.msra.mxu0 %v661
      %926 = vmatprep.mubr.f32.mxu0 %v566
      %927 = vmatmul.mubr.f32.gmra.mxu0 %v565
      %v928 = vpop.f32.mrf.mxu0
      %v929 = vadd.f32 %v736, %v928
      %v930 = vpop.f32.mrf.mxu0
      %931 = vmatprep.mubr.f32.mxu0 %v571
      %932 = vmatmul.mubr.f32.gmra.mxu0 %v570
      %v933 = vpop.f32.mrf.mxu0
      %v934 = vadd.f32 %v741, %v933
      %v935 = vpop.f32.mrf.mxu0
      %936 = vmatprep.mubr.f32.mxu0 %v576
      %937 = vmatmul.mubr.f32.gmra.mxu0 %v575
      %v938 = vpop.f32.mrf.mxu0
      %v939 = vadd.f32 %v746, %v938
      %v940 = vpop.f32.mrf.mxu0
      %941 = vmatprep.mubr.f32.mxu0 %v581
      %942 = vmatmul.mubr.f32.gmra.mxu0 %v580
      %v943 = vpop.f32.mrf.mxu0
      %v944 = vadd.f32 %v751, %v943
      %v945 = vpop.f32.mrf.mxu0
      %946 = vmatprep.mubr.f32.mxu0 %v586
      %947 = vmatmul.mubr.f32.gmra.mxu0 %v585
      %v948 = vpop.f32.mrf.mxu0
      %v949 = vadd.f32 %v756, %v948
      %v950 = vpop.f32.mrf.mxu0
      %951 = vmatprep.mubr.f32.mxu0 %v591
      %952 = vmatmul.mubr.f32.gmra.mxu0 %v590
      %v953 = vpop.f32.mrf.mxu0
      %v954 = vadd.f32 %v761, %v953
      %v955 = vpop.f32.mrf.mxu0
      %956 = vmatprep.mubr.f32.mxu0 %v596
      %957 = vmatmul.mubr.f32.gmra.mxu0 %v595
      %v958 = vpop.f32.mrf.mxu0
      %v959 = vadd.f32 %v766, %v958
      %v960 = vpop.f32.mrf.mxu0
      %961 = vmatprep.mubr.f32.mxu0 %v601
      %962 = vmatmul.mubr.f32.gmra.mxu0 %v600
      %v963 = vpop.f32.mrf.mxu0
      %v964 = vadd.f32 %v771, %v963
      %v965 = vpop.f32.mrf.mxu0
      %966 = vmatprep.mubr.f32.mxu0 %v606
      %967 = vmatmul.mubr.f32.gmra.mxu0 %v605
      %v968 = vpop.f32.mrf.mxu0
      %v969 = vadd.f32 %v776, %v968
      %v970 = vpop.f32.mrf.mxu0
      %971 = vmatprep.mubr.f32.mxu0 %v611
      %972 = vmatmul.mubr.f32.gmra.mxu0 %v610
      %v973 = vpop.f32.mrf.mxu0
      %v974 = vadd.f32 %v781, %v973
      %v975 = vpop.f32.mrf.mxu0
      %976 = vmatprep.mubr.f32.mxu0 %v616
      %977 = vmatmul.mubr.f32.gmra.mxu0 %v615
      %v978 = vpop.f32.mrf.mxu0
      %v979 = vadd.f32 %v786, %v978
      %v980 = vpop.f32.mrf.mxu0
      %981 = vmatprep.mubr.f32.mxu0 %v621
      %982 = vmatmul.mubr.f32.gmra.mxu0 %v620
      %v983 = vpop.f32.mrf.mxu0
      %v984 = vadd.f32 %v791, %v983
      %v985 = vpop.f32.mrf.mxu0
      %986 = vmatprep.mubr.f32.mxu0 %v626
      %987 = vmatmul.mubr.f32.gmra.mxu0 %v625
      %v988 = vpop.f32.mrf.mxu0
      %v989 = vadd.f32 %v796, %v988
      %v990 = vpop.f32.mrf.mxu0
      %991 = vmatprep.mubr.f32.mxu0 %v631
      %992 = vmatmul.mubr.f32.gmra.mxu0 %v630
      %v993 = vpop.f32.mrf.mxu0
      %v994 = vadd.f32 %v801, %v993
      %v995 = vpop.f32.mrf.mxu0
      %996 = vmatprep.mubr.f32.mxu0 %v636
      %997 = vmatmul.mubr.f32.gmra.mxu0 %v635
      %v998 = vpop.f32.mrf.mxu0
      %v999 = vadd.f32 %v806, %v998
      %v1000 = vpop.f32.mrf.mxu0
      %1001 = vmatprep.mubr.f32.mxu0 %v641
      %1002 = vmatmul.mubr.f32.gmra.mxu0 %v640
      %v1003 = vpop.f32.mrf.mxu0
      %v1004 = vadd.f32 %v811, %v1003
      %v1005 = vpop.f32.mrf.mxu0
      %1006 = vdwg.mxu0
      %1007 = vmatprep.subr.mxu0 0.0
      %1008 = vmatpush1.msra.mxu0 %v692
      %1009 = vmatprep.subr.mxu0 0.0
      %1010 = vmatpush1.msra.mxu0 %v691
      %1011 = vmatprep.subr.mxu0 0.0
      %1012 = vmatpush1.msra.mxu0 %v690
      %1013 = vmatprep.subr.mxu0 0.0
      %1014 = vmatpush1.msra.mxu0 %v689
      %1015 = vmatprep.subr.mxu0 0.0
      %1016 = vmatpush1.msra.mxu0 %v688
      %1017 = vmatprep.subr.mxu0 0.0
      %1018 = vmatpush1.msra.mxu0 %v687
      %1019 = vmatprep.subr.mxu0 0.0
      %1020 = vmatpush1.msra.mxu0 %v686
      %1021 = vmatprep.subr.mxu0 0.0
      %1022 = vmatpush1.msra.mxu0 %v685
      %1023 = vmatprep.subr.mxu0 0.0
      %1024 = vmatpush1.msra.mxu0 %v684
      %1025 = vmatprep.subr.mxu0 0.0
      %1026 = vmatpush1.msra.mxu0 %v683
      %1027 = vmatprep.subr.mxu0 0.0
      %1028 = vmatpush1.msra.mxu0 %v682
      %1029 = vmatprep.subr.mxu0 0.0
      %1030 = vmatpush1.msra.mxu0 %v681
      %1031 = vmatprep.subr.mxu0 0.0
      %1032 = vmatpush1.msra.mxu0 %v680
      %1033 = vmatprep.subr.mxu0 0.0
      %1034 = vmatpush1.msra.mxu0 %v679
      %1035 = vmatprep.subr.mxu0 0.0
      %1036 = vmatpush1.msra.mxu0 %v678
      %1037 = vmatprep.subr.mxu0 0.0
      %1038 = vmatpush1.msra.mxu0 %v677
      %1039 = vmatprep.subr.mxu0 0.0
      %1040 = vmatpush2.msra.mxu0 %v708
      %1041 = vmatprep.subr.mxu0 0.0
      %1042 = vmatpush2.msra.mxu0 %v707
      %1043 = vmatprep.subr.mxu0 0.0
      %1044 = vmatpush2.msra.mxu0 %v706
      %1045 = vmatprep.subr.mxu0 0.0
      %1046 = vmatpush2.msra.mxu0 %v705
      %1047 = vmatprep.subr.mxu0 0.0
      %1048 = vmatpush2.msra.mxu0 %v704
      %1049 = vmatprep.subr.mxu0 0.0
      %1050 = vmatpush2.msra.mxu0 %v703
      %1051 = vmatprep.subr.mxu0 0.0
      %1052 = vmatpush2.msra.mxu0 %v702
      %1053 = vmatprep.subr.mxu0 0.0
      %1054 = vmatpush2.msra.mxu0 %v701
      %1055 = vmatprep.subr.mxu0 0.0
      %1056 = vmatpush2.msra.mxu0 %v700
      %1057 = vmatprep.subr.mxu0 0.0
      %1058 = vmatpush2.msra.mxu0 %v699
      %1059 = vmatprep.subr.mxu0 0.0
      %1060 = vmatpush2.msra.mxu0 %v698
      %1061 = vmatprep.subr.mxu0 0.0
      %1062 = vmatpush2.msra.mxu0 %v697
      %1063 = vmatprep.subr.mxu0 0.0
      %1064 = vmatpush2.msra.mxu0 %v696
      %1065 = vmatprep.subr.mxu0 0.0
      %1066 = vmatpush2.msra.mxu0 %v695
      %1067 = vmatprep.subr.mxu0 0.0
      %1068 = vmatpush2.msra.mxu0 %v694
      %1069 = vmatprep.subr.mxu0 0.0
      %1070 = vmatpush2.msra.mxu0 %v693
      %1071 = vmatprep.mubr.f32.mxu0 %v568
      %1072 = vmatmul.mubr.f32.gmra.mxu0 %v567
      %v1073 = vpop.f32.mrf.mxu0
      %v1074 = vadd.f32 %v929, %v1073
      %v1075 = vpop.f32.mrf.mxu0
      %1076 = vmatprep.mubr.f32.mxu0 %v573
      %1077 = vmatmul.mubr.f32.gmra.mxu0 %v572
      %v1078 = vpop.f32.mrf.mxu0
      %v1079 = vadd.f32 %v934, %v1078
      %v1080 = vpop.f32.mrf.mxu0
      %1081 = vmatprep.mubr.f32.mxu0 %v578
      %1082 = vmatmul.mubr.f32.gmra.mxu0 %v577
      %v1083 = vpop.f32.mrf.mxu0
      %v1084 = vadd.f32 %v939, %v1083
      %v1085 = vpop.f32.mrf.mxu0
      %1086 = vmatprep.mubr.f32.mxu0 %v583
      %1087 = vmatmul.mubr.f32.gmra.mxu0 %v582
      %v1088 = vpop.f32.mrf.mxu0
      %v1089 = vadd.f32 %v944, %v1088
      %v1090 = vpop.f32.mrf.mxu0
      %1091 = vmatprep.mubr.f32.mxu0 %v588
      %1092 = vmatmul.mubr.f32.gmra.mxu0 %v587
      %v1093 = vpop.f32.mrf.mxu0
      %v1094 = vadd.f32 %v949, %v1093
      %v1095 = vpop.f32.mrf.mxu0
      %1096 = vmatprep.mubr.f32.mxu0 %v593
      %1097 = vmatmul.mubr.f32.gmra.mxu0 %v592
      %v1098 = vpop.f32.mrf.mxu0
      %v1099 = vadd.f32 %v954, %v1098
      %v1100 = vpop.f32.mrf.mxu0
      %1101 = vmatprep.mubr.f32.mxu0 %v598
      %1102 = vmatmul.mubr.f32.gmra.mxu0 %v597
      %v1103 = vpop.f32.mrf.mxu0
      %v1104 = vadd.f32 %v959, %v1103
      %v1105 = vpop.f32.mrf.mxu0
      %1106 = vmatprep.mubr.f32.mxu0 %v603
      %1107 = vmatmul.mubr.f32.gmra.mxu0 %v602
      %v1108 = vpop.f32.mrf.mxu0
      %v1109 = vadd.f32 %v964, %v1108
      %v1110 = vpop.f32.mrf.mxu0
      %1111 = vmatprep.mubr.f32.mxu0 %v608
      %1112 = vmatmul.mubr.f32.gmra.mxu0 %v607
      %v1113 = vpop.f32.mrf.mxu0
      %v1114 = vadd.f32 %v969, %v1113
      %v1115 = vpop.f32.mrf.mxu0
      %1116 = vmatprep.mubr.f32.mxu0 %v613
      %1117 = vmatmul.mubr.f32.gmra.mxu0 %v612
      %v1118 = vpop.f32.mrf.mxu0
      %v1119 = vadd.f32 %v974, %v1118
      %v1120 = vpop.f32.mrf.mxu0
      %1121 = vmatprep.mubr.f32.mxu0 %v618
      %1122 = vmatmul.mubr.f32.gmra.mxu0 %v617
      %v1123 = vpop.f32.mrf.mxu0
      %v1124 = vadd.f32 %v979, %v1123
      %v1125 = vpop.f32.mrf.mxu0
      %1126 = vmatprep.mubr.f32.mxu0 %v623
      %1127 = vmatmul.mubr.f32.gmra.mxu0 %v622
      %v1128 = vpop.f32.mrf.mxu0
      %v1129 = vadd.f32 %v984, %v1128
      %v1130 = vpop.f32.mrf.mxu0
      %1131 = vmatprep.mubr.f32.mxu0 %v628
      %1132 = vmatmul.mubr.f32.gmra.mxu0 %v627
      %v1133 = vpop.f32.mrf.mxu0
      %v1134 = vadd.f32 %v989, %v1133
      %v1135 = vpop.f32.mrf.mxu0
      %1136 = vmatprep.mubr.f32.mxu0 %v633
      %1137 = vmatmul.mubr.f32.gmra.mxu0 %v632
      %v1138 = vpop.f32.mrf.mxu0
      %v1139 = vadd.f32 %v994, %v1138
      %v1140 = vpop.f32.mrf.mxu0
      %1141 = vmatprep.mubr.f32.mxu0 %v638
      %1142 = vmatmul.mubr.f32.gmra.mxu0 %v637
      %v1143 = vpop.f32.mrf.mxu0
      %v1144 = vadd.f32 %v999, %v1143
      %v1145 = vpop.f32.mrf.mxu0
      %1146 = vmatprep.mubr.f32.mxu0 %v643
      %1147 = vmatmul.mubr.f32.gmra.mxu0 %v642
      %v1148 = vpop.f32.mrf.mxu0
      %v1149 = vadd.f32 %v1004, %v1148
      %v1150 = vpop.f32.mrf.mxu0
      %1151 = vdwg.mxu0
      %1152 = vmatprep.subr.mxu0 0.0
      %1153 = vmatpush1.msra.mxu0 0.0
      %1154 = vmatprep.subr.mxu0 0.0
      %1155 = vmatpush1.msra.mxu0 0.0
      %1156 = vmatprep.subr.mxu0 0.0
      %1157 = vmatpush1.msra.mxu0 0.0
      %1158 = vmatprep.subr.mxu0 0.0
      %1159 = vmatpush1.msra.mxu0 0.0
      %1160 = vmatprep.subr.mxu0 0.0
      %1161 = vmatpush1.msra.mxu0 0.0
      %1162 = vmatprep.subr.mxu0 0.0
      %1163 = vmatpush1.msra.mxu0 0.0
      %1164 = vmatprep.subr.mxu0 0.0
      %1165 = vmatpush1.msra.mxu0 0.0
      %1166 = vmatprep.subr.mxu0 0.0
      %1167 = vmatpush1.msra.mxu0 0.0
      %1168 = vmatprep.subr.mxu0 0.0
      %1169 = vmatpush1.msra.mxu0 %v716
      %1170 = vmatprep.subr.mxu0 0.0
      %1171 = vmatpush1.msra.mxu0 %v715
      %1172 = vmatprep.subr.mxu0 0.0
      %1173 = vmatpush1.msra.mxu0 %v714
      %1174 = vmatprep.subr.mxu0 0.0
      %1175 = vmatpush1.msra.mxu0 %v713
      %1176 = vmatprep.subr.mxu0 0.0
      %1177 = vmatpush1.msra.mxu0 %v712
      %1178 = vmatprep.subr.mxu0 0.0
      %1179 = vmatpush1.msra.mxu0 %v711
      %1180 = vmatprep.subr.mxu0 0.0
      %1181 = vmatpush1.msra.mxu0 %v710
      %1182 = vmatprep.subr.mxu0 0.0
      %1183 = vmatpush1.msra.mxu0 %v709
      %1184 = vmatprep.subr.mxu0 0.0
      %1185 = vmatpush2.msra.mxu0 0.0
      %1186 = vmatprep.subr.mxu0 0.0
      %1187 = vmatpush2.msra.mxu0 0.0
      %1188 = vmatprep.subr.mxu0 0.0
      %1189 = vmatpush2.msra.mxu0 0.0
      %1190 = vmatprep.subr.mxu0 0.0
      %1191 = vmatpush2.msra.mxu0 0.0
      %1192 = vmatprep.subr.mxu0 0.0
      %1193 = vmatpush2.msra.mxu0 0.0
      %1194 = vmatprep.subr.mxu0 0.0
      %1195 = vmatpush2.msra.mxu0 0.0
      %1196 = vmatprep.subr.mxu0 0.0
      %1197 = vmatpush2.msra.mxu0 0.0
      %1198 = vmatprep.subr.mxu0 0.0
      %1199 = vmatpush2.msra.mxu0 0.0
      %1200 = vmatprep.subr.mxu0 0.0
      %1201 = vmatpush2.msra.mxu0 0.0
      %1202 = vmatprep.subr.mxu0 0.0
      %1203 = vmatpush2.msra.mxu0 0.0
      %1204 = vmatprep.subr.mxu0 0.0
      %1205 = vmatpush2.msra.mxu0 0.0
      %1206 = vmatprep.subr.mxu0 0.0
      %1207 = vmatpush2.msra.mxu0 0.0
      %1208 = vmatprep.subr.mxu0 0.0
      %1209 = vmatpush2.msra.mxu0 0.0
      %1210 = vmatprep.subr.mxu0 0.0
      %1211 = vmatpush2.msra.mxu0 0.0
      %1212 = vmatprep.subr.mxu0 0.0
      %1213 = vmatpush2.msra.mxu0 0.0
      %1214 = vmatprep.subr.mxu0 0.0
      %1215 = vmatpush2.msra.mxu0 0.0
      %1216 = vmatprep.mubr.f32.mxu0 0.0
      %1217 = vmatmul.mubr.f32.gmra.mxu0 %v815
      %v1218 = vpop.f32.mrf.mxu0
      %v1219 = vadd.f32 %v1074, %v1218
      %v1220 = vpop.f32.mrf.mxu0
      %1221 = vmatprep.mubr.f32.mxu0 0.0
      %1222 = vmatmul.mubr.f32.gmra.mxu0 %v818
      %v1223 = vpop.f32.mrf.mxu0
      %v1224 = vadd.f32 %v1079, %v1223
      %v1225 = vpop.f32.mrf.mxu0
      %1226 = vmatprep.mubr.f32.mxu0 0.0
      %1227 = vmatmul.mubr.f32.gmra.mxu0 %v821
      %v1228 = vpop.f32.mrf.mxu0
      %v1229 = vadd.f32 %v1084, %v1228
      %v1230 = vpop.f32.mrf.mxu0
      %1231 = vmatprep.mubr.f32.mxu0 0.0
      %1232 = vmatmul.mubr.f32.gmra.mxu0 %v824
      %v1233 = vpop.f32.mrf.mxu0
      %v1234 = vadd.f32 %v1089, %v1233
      %v1235 = vpop.f32.mrf.mxu0
      %1236 = vmatprep.mubr.f32.mxu0 0.0
      %1237 = vmatmul.mubr.f32.gmra.mxu0 %v827
      %v1238 = vpop.f32.mrf.mxu0
      %v1239 = vadd.f32 %v1094, %v1238
      %v1240 = vpop.f32.mrf.mxu0
      %1241 = vmatprep.mubr.f32.mxu0 0.0
      %1242 = vmatmul.mubr.f32.gmra.mxu0 %v830
      %v1243 = vpop.f32.mrf.mxu0
      %v1244 = vadd.f32 %v1099, %v1243
      %v1245 = vpop.f32.mrf.mxu0
      %1246 = vmatprep.mubr.f32.mxu0 0.0
      %1247 = vmatmul.mubr.f32.gmra.mxu0 %v833
      %v1248 = vpop.f32.mrf.mxu0
      %v1249 = vadd.f32 %v1104, %v1248
      %v1250 = vpop.f32.mrf.mxu0
      %1251 = vmatprep.mubr.f32.mxu0 0.0
      %1252 = vmatmul.mubr.f32.gmra.mxu0 %v836
      %v1253 = vpop.f32.mrf.mxu0
      %v1254 = vadd.f32 %v1109, %v1253
      %v1255 = vpop.f32.mrf.mxu0
      %1256 = vmatprep.mubr.f32.mxu0 0.0
      %1257 = vmatmul.mubr.f32.gmra.mxu0 %v839
      %v1258 = vpop.f32.mrf.mxu0
      %v1259 = vadd.f32 %v1114, %v1258
      %v1260 = vpop.f32.mrf.mxu0
      %1261 = vmatprep.mubr.f32.mxu0 0.0
      %1262 = vmatmul.mubr.f32.gmra.mxu0 %v842
      %v1263 = vpop.f32.mrf.mxu0
      %v1264 = vadd.f32 %v1119, %v1263
      %v1265 = vpop.f32.mrf.mxu0
      %1266 = vmatprep.mubr.f32.mxu0 0.0
      %1267 = vmatmul.mubr.f32.gmra.mxu0 %v845
      %v1268 = vpop.f32.mrf.mxu0
      %v1269 = vadd.f32 %v1124, %v1268
      %v1270 = vpop.f32.mrf.mxu0
      %1271 = vmatprep.mubr.f32.mxu0 0.0
      %1272 = vmatmul.mubr.f32.gmra.mxu0 %v848
      %v1273 = vpop.f32.mrf.mxu0
      %v1274 = vadd.f32 %v1129, %v1273
      %v1275 = vpop.f32.mrf.mxu0
      %1276 = vmatprep.mubr.f32.mxu0 0.0
      %1277 = vmatmul.mubr.f32.gmra.mxu0 %v851
      %v1278 = vpop.f32.mrf.mxu0
      %v1279 = vadd.f32 %v1134, %v1278
      %v1280 = vpop.f32.mrf.mxu0
      %1281 = vmatprep.mubr.f32.mxu0 0.0
      %1282 = vmatmul.mubr.f32.gmra.mxu0 %v854
      %v1283 = vpop.f32.mrf.mxu0
      %v1284 = vadd.f32 %v1139, %v1283
      %v1285 = vpop.f32.mrf.mxu0
      %1286 = vmatprep.mubr.f32.mxu0 0.0
      %1287 = vmatmul.mubr.f32.gmra.mxu0 %v857
      %v1288 = vpop.f32.mrf.mxu0
      %v1289 = vadd.f32 %v1144, %v1288
      %v1290 = vpop.f32.mrf.mxu0
      %1291 = vmatprep.mubr.f32.mxu0 0.0
      %1292 = vmatmul.mubr.f32.gmra.mxu0 %v860
      %v1293 = vpop.f32.mrf.mxu0
      %v1294 = vadd.f32 %v1149, %v1293
      %v1295 = vpop.f32.mrf.mxu0
      %1296 = vdwg.mxu0
      %v1297 = vld [vmem:[%s3] sm:$0xff]
      %v1298 = vld [vmem:[%s3 + $0x8] sm:$0xff]
      %v1300 = vsel %vm227, %v1219, 0
      %v1303 = vsel %vm227, %v1224, 0
      %v1306 = vsel %vm227, %v1229, 0
      %v1309 = vsel %vm227, %v1234, 0
      %v1312 = vsel %vm227, %v1239, 0
      %v1315 = vsel %vm227, %v1244, 0
      %v1318 = vsel %vm227, %v1249, 0
      %v1321 = vsel %vm227, %v1254, 0
      %v1324 = vsel %vm227, %v1259, 0
      %v1327 = vsel %vm227, %v1264, 0
      %v1330 = vsel %vm227, %v1269, 0
      %v1333 = vsel %vm227, %v1274, 0
      %v1336 = vsel %vm227, %v1279, 0
      %v1339 = vsel %vm227, %v1284, 0
      %v1342 = vsel %vm227, %v1289, 0
      %v1345 = vsel %vm227, %v1294, 0
      %1347 = vmatprep.subr.mxu0 0.0
      %1348 = vmatpush1.msra.mxu0 0.0
      %1349 = vmatprep.subr.mxu0 0.0
      %1350 = vmatpush1.msra.mxu0 0.0
      %1351 = vmatprep.subr.mxu0 0.0
      %1352 = vmatpush1.msra.mxu0 0.0
      %1353 = vmatprep.subr.mxu0 0.0
      %1354 = vmatpush1.msra.mxu0 0.0
      %1355 = vmatprep.subr.mxu0 0.0
      %1356 = vmatpush1.msra.mxu0 0.0
      %1357 = vmatprep.subr.mxu0 0.0
      %1358 = vmatpush1.msra.mxu0 0.0
      %1359 = vmatprep.subr.mxu0 0.0
      %1360 = vmatpush1.msra.mxu0 0.0
      %1361 = vmatprep.subr.mxu0 0.0
      %1362 = vmatpush1.msra.mxu0 0.0
      %1363 = vmatprep.subr.mxu0 0.0
      %1364 = vmatpush1.msra.mxu0 0.0
      %1365 = vmatprep.subr.mxu0 0.0
      %1366 = vmatpush1.msra.mxu0 0.0
      %1367 = vmatprep.subr.mxu0 0.0
      %1368 = vmatpush1.msra.mxu0 0.0
      %1369 = vmatprep.subr.mxu0 0.0
      %1370 = vmatpush1.msra.mxu0 0.0
      %1371 = vmatprep.subr.mxu0 0.0
      %1372 = vmatpush1.msra.mxu0 0.0
      %1373 = vmatprep.subr.mxu0 0.0
      %1374 = vmatpush1.msra.mxu0 0.0
      %1375 = vmatprep.subr.mxu0 0.0
      %1376 = vmatpush1.msra.mxu0 %v1298
      %1377 = vmatprep.subr.mxu0 0.0
      %1378 = vmatpush1.msra.mxu0 %v1297
      %1379 = vmatprep.subr.mxu0 0.0
      %1380 = vmatpush2.msra.mxu0 0.0
      %1381 = vmatprep.subr.mxu0 0.0
      %1382 = vmatpush2.msra.mxu0 0.0
      %1383 = vmatprep.subr.mxu0 0.0
      %1384 = vmatpush2.msra.mxu0 0.0
      %1385 = vmatprep.subr.mxu0 0.0
      %1386 = vmatpush2.msra.mxu0 0.0
      %1387 = vmatprep.subr.mxu0 0.0
      %1388 = vmatpush2.msra.mxu0 0.0
      %1389 = vmatprep.subr.mxu0 0.0
      %1390 = vmatpush2.msra.mxu0 0.0
      %1391 = vmatprep.subr.mxu0 0.0
      %1392 = vmatpush2.msra.mxu0 0.0
      %1393 = vmatprep.subr.mxu0 0.0
      %1394 = vmatpush2.msra.mxu0 0.0
      %1395 = vmatprep.subr.mxu0 0.0
      %1396 = vmatpush2.msra.mxu0 0.0
      %1397 = vmatprep.subr.mxu0 0.0
      %1398 = vmatpush2.msra.mxu0 0.0
      %1399 = vmatprep.subr.mxu0 0.0
      %1400 = vmatpush2.msra.mxu0 0.0
      %1401 = vmatprep.subr.mxu0 0.0
      %1402 = vmatpush2.msra.mxu0 0.0
      %1403 = vmatprep.subr.mxu0 0.0
      %1404 = vmatpush2.msra.mxu0 0.0
      %1405 = vmatprep.subr.mxu0 0.0
      %1406 = vmatpush2.msra.mxu0 0.0
      %1407 = vmatprep.subr.mxu0 0.0
      %1408 = vmatpush2.msra.mxu0 0.0
      %1409 = vmatprep.subr.mxu0 0.0
      %1410 = vmatpush2.msra.mxu0 0.0
      %1411 = vmatprep.mubr.f32.mxu0 0.0
      %1412 = vmatmul.mubr.f32.gmra.mxu0 %v1300
      %v1413 = vpop.f32.mrf.mxu0
      %v1414 = vadd.f32 0.0, %v1413
      %v1415 = vpop.f32.mrf.mxu0
      %1416 = vmatprep.mubr.f32.mxu0 0.0
      %1417 = vmatmul.mubr.f32.gmra.mxu0 %v1303
      %v1418 = vpop.f32.mrf.mxu0
      %v1419 = vadd.f32 0.0, %v1418
      %v1420 = vpop.f32.mrf.mxu0
      %1421 = vmatprep.mubr.f32.mxu0 0.0
      %1422 = vmatmul.mubr.f32.gmra.mxu0 %v1306
      %v1423 = vpop.f32.mrf.mxu0
      %v1424 = vadd.f32 0.0, %v1423
      %v1425 = vpop.f32.mrf.mxu0
      %1426 = vmatprep.mubr.f32.mxu0 0.0
      %1427 = vmatmul.mubr.f32.gmra.mxu0 %v1309
      %v1428 = vpop.f32.mrf.mxu0
      %v1429 = vadd.f32 0.0, %v1428
      %v1430 = vpop.f32.mrf.mxu0
      %1431 = vmatprep.mubr.f32.mxu0 0.0
      %1432 = vmatmul.mubr.f32.gmra.mxu0 %v1312
      %v1433 = vpop.f32.mrf.mxu0
      %v1434 = vadd.f32 0.0, %v1433
      %v1435 = vpop.f32.mrf.mxu0
      %1436 = vmatprep.mubr.f32.mxu0 0.0
      %1437 = vmatmul.mubr.f32.gmra.mxu0 %v1315
      %v1438 = vpop.f32.mrf.mxu0
      %v1439 = vadd.f32 0.0, %v1438
      %v1440 = vpop.f32.mrf.mxu0
      %1441 = vmatprep.mubr.f32.mxu0 0.0
      %1442 = vmatmul.mubr.f32.gmra.mxu0 %v1318
      %v1443 = vpop.f32.mrf.mxu0
      %v1444 = vadd.f32 0.0, %v1443
      %v1445 = vpop.f32.mrf.mxu0
      %1446 = vmatprep.mubr.f32.mxu0 0.0
      %1447 = vmatmul.mubr.f32.gmra.mxu0 %v1321
      %v1448 = vpop.f32.mrf.mxu0
      %v1449 = vadd.f32 0.0, %v1448
      %v1450 = vpop.f32.mrf.mxu0
      %1451 = vmatprep.mubr.f32.mxu0 0.0
      %1452 = vmatmul.mubr.f32.gmra.mxu0 %v1324
      %v1453 = vpop.f32.mrf.mxu0
      %v1454 = vadd.f32 0.0, %v1453
      %v1455 = vpop.f32.mrf.mxu0
      %1456 = vmatprep.mubr.f32.mxu0 0.0
      %1457 = vmatmul.mubr.f32.gmra.mxu0 %v1327
      %v1458 = vpop.f32.mrf.mxu0
      %v1459 = vadd.f32 0.0, %v1458
      %v1460 = vpop.f32.mrf.mxu0
      %1461 = vmatprep.mubr.f32.mxu0 0.0
      %1462 = vmatmul.mubr.f32.gmra.mxu0 %v1330
      %v1463 = vpop.f32.mrf.mxu0
      %v1464 = vadd.f32 0.0, %v1463
      %v1465 = vpop.f32.mrf.mxu0
      %1466 = vmatprep.mubr.f32.mxu0 0.0
      %1467 = vmatmul.mubr.f32.gmra.mxu0 %v1333
      %v1468 = vpop.f32.mrf.mxu0
      %v1469 = vadd.f32 0.0, %v1468
      %v1470 = vpop.f32.mrf.mxu0
      %1471 = vmatprep.mubr.f32.mxu0 0.0
      %1472 = vmatmul.mubr.f32.gmra.mxu0 %v1336
      %v1473 = vpop.f32.mrf.mxu0
      %v1474 = vadd.f32 0.0, %v1473
      %v1475 = vpop.f32.mrf.mxu0
      %1476 = vmatprep.mubr.f32.mxu0 0.0
      %1477 = vmatmul.mubr.f32.gmra.mxu0 %v1339
      %v1478 = vpop.f32.mrf.mxu0
      %v1479 = vadd.f32 0.0, %v1478
      %v1480 = vpop.f32.mrf.mxu0
      %1481 = vmatprep.mubr.f32.mxu0 0.0
      %1482 = vmatmul.mubr.f32.gmra.mxu0 %v1342
      %v1483 = vpop.f32.mrf.mxu0
      %v1484 = vadd.f32 0.0, %v1483
      %v1485 = vpop.f32.mrf.mxu0
      %1486 = vmatprep.mubr.f32.mxu0 0.0
      %1487 = vmatmul.mubr.f32.gmra.mxu0 %v1345
      %v1488 = vpop.f32.mrf.mxu0
      %v1489 = vadd.f32 0.0, %v1488
      %v1490 = vpop.f32.mrf.mxu0
      %1491 = vdwg.mxu0
      %v1492 = vld [vmem:[%s4] sm:$0xff]
      %v1493 = vld [vmem:[%s4 + $0x8] sm:$0xff]
      %v1494 = vld [vmem:[%s4 + $0x10] sm:$0xff]
      %v1495 = vld [vmem:[%s4 + $0x18] sm:$0xff]
      %v1496 = vld [vmem:[%s4 + $0x20] sm:$0xff]
      %v1497 = vld [vmem:[%s4 + $0x28] sm:$0xff]
      %v1498 = vld [vmem:[%s4 + $0x30] sm:$0xff]
      %v1499 = vld [vmem:[%s4 + $0x38] sm:$0xff]
      %v1500 = vld [vmem:[%s4 + $0x40] sm:$0xff]
      %v1501 = vld [vmem:[%s4 + $0x48] sm:$0xff]
      %v1502 = vld [vmem:[%s4 + $0x50] sm:$0xff]
      %v1503 = vld [vmem:[%s4 + $0x58] sm:$0xff]
      %v1504 = vld [vmem:[%s4 + $0x60] sm:$0xff]
      %v1505 = vld [vmem:[%s4 + $0x68] sm:$0xff]
      %v1506 = vld [vmem:[%s4 + $0x70] sm:$0xff]
      %v1507 = vld [vmem:[%s4 + $0x78] sm:$0xff]
      %v1508 = vld [vmem:[%s4 + $0x80] sm:$0xff]
      %v1509 = vld [vmem:[%s4 + $0x88] sm:$0xff]
      %v1510 = vld [vmem:[%s4 + $0x90] sm:$0xff]
      %v1511 = vld [vmem:[%s4 + $0x98] sm:$0xff]
      %v1512 = vld [vmem:[%s4 + $0xa0] sm:$0xff]
      %v1513 = vld [vmem:[%s4 + $0xa8] sm:$0xff]
      %v1514 = vld [vmem:[%s4 + $0xb0] sm:$0xff]
      %v1515 = vld [vmem:[%s4 + $0xb8] sm:$0xff]
      %v1516 = vld [vmem:[%s4 + $0xc0] sm:$0xff]
      %v1517 = vld [vmem:[%s4 + $0xc8] sm:$0xff]
      %v1518 = vld [vmem:[%s4 + $0xd0] sm:$0xff]
      %v1519 = vld [vmem:[%s4 + $0xd8] sm:$0xff]
      %v1520 = vld [vmem:[%s4 + $0xe0] sm:$0xff]
      %v1521 = vld [vmem:[%s4 + $0xe8] sm:$0xff]
      %v1522 = vld [vmem:[%s4 + $0xf0] sm:$0xff]
      %v1523 = vld [vmem:[%s4 + $0xf8] sm:$0xff]
      %1524 = vmatprep.subr.mxu0 0.0
      %1525 = vmatpush1.msra.mxu0 %v1489
      %1526 = vmatprep.subr.mxu0 0.0
      %1527 = vmatpush1.msra.mxu0 %v1484
      %1528 = vmatprep.subr.mxu0 0.0
      %1529 = vmatpush1.msra.mxu0 %v1479
      %1530 = vmatprep.subr.mxu0 0.0
      %1531 = vmatpush1.msra.mxu0 %v1474
      %1532 = vmatprep.subr.mxu0 0.0
      %1533 = vmatpush1.msra.mxu0 %v1469
      %1534 = vmatprep.subr.mxu0 0.0
      %1535 = vmatpush1.msra.mxu0 %v1464
      %1536 = vmatprep.subr.mxu0 0.0
      %1537 = vmatpush1.msra.mxu0 %v1459
      %1538 = vmatprep.subr.mxu0 0.0
      %1539 = vmatpush1.msra.mxu0 %v1454
      %1540 = vmatprep.subr.mxu0 0.0
      %1541 = vmatpush1.msra.mxu0 %v1449
      %1542 = vmatprep.subr.mxu0 0.0
      %1543 = vmatpush1.msra.mxu0 %v1444
      %1544 = vmatprep.subr.mxu0 0.0
      %1545 = vmatpush1.msra.mxu0 %v1439
      %1546 = vmatprep.subr.mxu0 0.0
      %1547 = vmatpush1.msra.mxu0 %v1434
      %1548 = vmatprep.subr.mxu0 0.0
      %1549 = vmatpush1.msra.mxu0 %v1429
      %1550 = vmatprep.subr.mxu0 0.0
      %1551 = vmatpush1.msra.mxu0 %v1424
      %1552 = vmatprep.subr.mxu0 0.0
      %1553 = vmatpush1.msra.mxu0 %v1419
      %1554 = vmatprep.subr.mxu0 0.0
      %1555 = vmatpush1.msra.mxu0 %v1414
      %1556 = vmatprep.subr.mxu0 0.0
      %1557 = vmatpush2.msra.mxu0 0.0
      %1558 = vmatprep.subr.mxu0 0.0
      %1559 = vmatpush2.msra.mxu0 0.0
      %1560 = vmatprep.subr.mxu0 0.0
      %1561 = vmatpush2.msra.mxu0 0.0
      %1562 = vmatprep.subr.mxu0 0.0
      %1563 = vmatpush2.msra.mxu0 0.0
      %1564 = vmatprep.subr.mxu0 0.0
      %1565 = vmatpush2.msra.mxu0 0.0
      %1566 = vmatprep.subr.mxu0 0.0
      %1567 = vmatpush2.msra.mxu0 0.0
      %1568 = vmatprep.subr.mxu0 0.0
      %1569 = vmatpush2.msra.mxu0 0.0
      %1570 = vmatprep.subr.mxu0 0.0
      %1571 = vmatpush2.msra.mxu0 0.0
      %1572 = vmatprep.subr.mxu0 0.0
      %1573 = vmatpush2.msra.mxu0 0.0
      %1574 = vmatprep.subr.mxu0 0.0
      %1575 = vmatpush2.msra.mxu0 0.0
      %1576 = vmatprep.subr.mxu0 0.0
      %1577 = vmatpush2.msra.mxu0 0.0
      %1578 = vmatprep.subr.mxu0 0.0
      %1579 = vmatpush2.msra.mxu0 0.0
      %1580 = vmatprep.subr.mxu0 0.0
      %1581 = vmatpush2.msra.mxu0 0.0
      %1582 = vmatprep.subr.mxu0 0.0
      %1583 = vmatpush2.msra.mxu0 0.0
      %1584 = vmatprep.subr.mxu0 0.0
      %1585 = vmatpush2.msra.mxu0 0.0
      %1586 = vmatprep.subr.mxu0 0.0
      %1587 = vmatpush2.msra.mxu0 0.0
      %1588 = vmatprep.mubr.f32.mxu0 0.0
      %1589 = vmatmul.mubr.f32.gmra.mxu0 %v1492
      %v1590 = vpop.f32.mrf.mxu0
      %v1591 = vadd.f32 0.0, %v1590
      %v1592 = vpop.f32.mrf.mxu0
      %1593 = vmatprep.mubr.f32.mxu0 0.0
      %1594 = vmatmul.mubr.f32.gmra.mxu0 %v1493
      %v1595 = vpop.f32.mrf.mxu0
      %v1596 = vadd.f32 0.0, %v1595
      %v1597 = vpop.f32.mrf.mxu0
      %1598 = vmatprep.mubr.f32.mxu0 0.0
      %1599 = vmatmul.mubr.f32.gmra.mxu0 %v1494
      %v1600 = vpop.f32.mrf.mxu0
      %v1601 = vadd.f32 0.0, %v1600
      %v1602 = vpop.f32.mrf.mxu0
      %1603 = vmatprep.mubr.f32.mxu0 0.0
      %1604 = vmatmul.mubr.f32.gmra.mxu0 %v1495
      %v1605 = vpop.f32.mrf.mxu0
      %v1606 = vadd.f32 0.0, %v1605
      %v1607 = vpop.f32.mrf.mxu0
      %1608 = vmatprep.mubr.f32.mxu0 0.0
      %1609 = vmatmul.mubr.f32.gmra.mxu0 %v1496
      %v1610 = vpop.f32.mrf.mxu0
      %v1611 = vadd.f32 0.0, %v1610
      %v1612 = vpop.f32.mrf.mxu0
      %1613 = vmatprep.mubr.f32.mxu0 0.0
      %1614 = vmatmul.mubr.f32.gmra.mxu0 %v1497
      %v1615 = vpop.f32.mrf.mxu0
      %v1616 = vadd.f32 0.0, %v1615
      %v1617 = vpop.f32.mrf.mxu0
      %1618 = vmatprep.mubr.f32.mxu0 0.0
      %1619 = vmatmul.mubr.f32.gmra.mxu0 %v1498
      %v1620 = vpop.f32.mrf.mxu0
      %v1621 = vadd.f32 0.0, %v1620
      %v1622 = vpop.f32.mrf.mxu0
      %1623 = vmatprep.mubr.f32.mxu0 0.0
      %1624 = vmatmul.mubr.f32.gmra.mxu0 %v1499
      %v1625 = vpop.f32.mrf.mxu0
      %v1626 = vadd.f32 0.0, %v1625
      %v1627 = vpop.f32.mrf.mxu0
      %1628 = vmatprep.mubr.f32.mxu0 0.0
      %1629 = vmatmul.mubr.f32.gmra.mxu0 %v1500
      %v1630 = vpop.f32.mrf.mxu0
      %v1631 = vadd.f32 0.0, %v1630
      %v1632 = vpop.f32.mrf.mxu0
      %1633 = vmatprep.mubr.f32.mxu0 0.0
      %1634 = vmatmul.mubr.f32.gmra.mxu0 %v1501
      %v1635 = vpop.f32.mrf.mxu0
      %v1636 = vadd.f32 0.0, %v1635
      %v1637 = vpop.f32.mrf.mxu0
      %1638 = vmatprep.mubr.f32.mxu0 0.0
      %1639 = vmatmul.mubr.f32.gmra.mxu0 %v1502
      %v1640 = vpop.f32.mrf.mxu0
      %v1641 = vadd.f32 0.0, %v1640
      %v1642 = vpop.f32.mrf.mxu0
      %1643 = vmatprep.mubr.f32.mxu0 0.0
      %1644 = vmatmul.mubr.f32.gmra.mxu0 %v1503
      %v1645 = vpop.f32.mrf.mxu0
      %v1646 = vadd.f32 0.0, %v1645
      %v1647 = vpop.f32.mrf.mxu0
      %1648 = vmatprep.mubr.f32.mxu0 0.0
      %1649 = vmatmul.mubr.f32.gmra.mxu0 %v1504
      %v1650 = vpop.f32.mrf.mxu0
      %v1651 = vadd.f32 0.0, %v1650
      %v1652 = vpop.f32.mrf.mxu0
      %1653 = vmatprep.mubr.f32.mxu0 0.0
      %1654 = vmatmul.mubr.f32.gmra.mxu0 %v1505
      %v1655 = vpop.f32.mrf.mxu0
      %v1656 = vadd.f32 0.0, %v1655
      %v1657 = vpop.f32.mrf.mxu0
      %1658 = vmatprep.mubr.f32.mxu0 0.0
      %1659 = vmatmul.mubr.f32.gmra.mxu0 %v1506
      %v1660 = vpop.f32.mrf.mxu0
      %v1661 = vadd.f32 0.0, %v1660
      %v1662 = vpop.f32.mrf.mxu0
      %1663 = vmatprep.mubr.f32.mxu0 0.0
      %1664 = vmatmul.mubr.f32.gmra.mxu0 %v1507
      %v1665 = vpop.f32.mrf.mxu0
      %v1666 = vadd.f32 0.0, %v1665
      %v1667 = vpop.f32.mrf.mxu0
      %1668 = vmatprep.mubr.f32.mxu0 0.0
      %1669 = vmatmul.mubr.f32.gmra.mxu0 %v1508
      %v1670 = vpop.f32.mrf.mxu0
      %v1671 = vadd.f32 0.0, %v1670
      %v1672 = vpop.f32.mrf.mxu0
      %1673 = vmatprep.mubr.f32.mxu0 0.0
      %1674 = vmatmul.mubr.f32.gmra.mxu0 %v1509
      %v1675 = vpop.f32.mrf.mxu0
      %v1676 = vadd.f32 0.0, %v1675
      %v1677 = vpop.f32.mrf.mxu0
      %1678 = vmatprep.mubr.f32.mxu0 0.0
      %1679 = vmatmul.mubr.f32.gmra.mxu0 %v1510
      %v1680 = vpop.f32.mrf.mxu0
      %v1681 = vadd.f32 0.0, %v1680
      %v1682 = vpop.f32.mrf.mxu0
      %1683 = vmatprep.mubr.f32.mxu0 0.0
      %1684 = vmatmul.mubr.f32.gmra.mxu0 %v1511
      %v1685 = vpop.f32.mrf.mxu0
      %v1686 = vadd.f32 0.0, %v1685
      %v1687 = vpop.f32.mrf.mxu0
      %1688 = vmatprep.mubr.f32.mxu0 0.0
      %1689 = vmatmul.mubr.f32.gmra.mxu0 %v1512
      %v1690 = vpop.f32.mrf.mxu0
      %v1691 = vadd.f32 0.0, %v1690
      %v1692 = vpop.f32.mrf.mxu0
      %1693 = vmatprep.mubr.f32.mxu0 0.0
      %1694 = vmatmul.mubr.f32.gmra.mxu0 %v1513
      %v1695 = vpop.f32.mrf.mxu0
      %v1696 = vadd.f32 0.0, %v1695
      %v1697 = vpop.f32.mrf.mxu0
      %1698 = vmatprep.mubr.f32.mxu0 0.0
      %1699 = vmatmul.mubr.f32.gmra.mxu0 %v1514
      %v1700 = vpop.f32.mrf.mxu0
      %v1701 = vadd.f32 0.0, %v1700
      %v1702 = vpop.f32.mrf.mxu0
      %1703 = vmatprep.mubr.f32.mxu0 0.0
      %1704 = vmatmul.mubr.f32.gmra.mxu0 %v1515
      %v1705 = vpop.f32.mrf.mxu0
      %v1706 = vadd.f32 0.0, %v1705
      %v1707 = vpop.f32.mrf.mxu0
      %1708 = vmatprep.mubr.f32.mxu0 0.0
      %1709 = vmatmul.mubr.f32.gmra.mxu0 %v1516
      %v1710 = vpop.f32.mrf.mxu0
      %v1711 = vadd.f32 0.0, %v1710
      %v1712 = vpop.f32.mrf.mxu0
      %1713 = vmatprep.mubr.f32.mxu0 0.0
      %1714 = vmatmul.mubr.f32.gmra.mxu0 %v1517
      %v1715 = vpop.f32.mrf.mxu0
      %v1716 = vadd.f32 0.0, %v1715
      %v1717 = vpop.f32.mrf.mxu0
      %1718 = vmatprep.mubr.f32.mxu0 0.0
      %1719 = vmatmul.mubr.f32.gmra.mxu0 %v1518
      %v1720 = vpop.f32.mrf.mxu0
      %v1721 = vadd.f32 0.0, %v1720
      %v1722 = vpop.f32.mrf.mxu0
      %1723 = vmatprep.mubr.f32.mxu0 0.0
      %1724 = vmatmul.mubr.f32.gmra.mxu0 %v1519
      %v1725 = vpop.f32.mrf.mxu0
      %v1726 = vadd.f32 0.0, %v1725
      %v1727 = vpop.f32.mrf.mxu0
      %1728 = vmatprep.mubr.f32.mxu0 0.0
      %1729 = vmatmul.mubr.f32.gmra.mxu0 %v1520
      %v1730 = vpop.f32.mrf.mxu0
      %v1731 = vadd.f32 0.0, %v1730
      %v1732 = vpop.f32.mrf.mxu0
      %1733 = vmatprep.mubr.f32.mxu0 0.0
      %1734 = vmatmul.mubr.f32.gmra.mxu0 %v1521
      %v1735 = vpop.f32.mrf.mxu0
      %v1736 = vadd.f32 0.0, %v1735
      %v1737 = vpop.f32.mrf.mxu0
      %1738 = vmatprep.mubr.f32.mxu0 0.0
      %1739 = vmatmul.mubr.f32.gmra.mxu0 %v1522
      %v1740 = vpop.f32.mrf.mxu0
      %v1741 = vadd.f32 0.0, %v1740
      %v1742 = vpop.f32.mrf.mxu0
      %1743 = vmatprep.mubr.f32.mxu0 0.0
      %1744 = vmatmul.mubr.f32.gmra.mxu0 %v1523
      %v1745 = vpop.f32.mrf.mxu0
      %v1746 = vadd.f32 0.0, %v1745
      %v1747 = vpop.f32.mrf.mxu0
      %1748 = vdwg.mxu0
      %v1749 = vmax.f32 %v1591, 0.0
      %v1750 = vmax.f32 %v1596, 0.0
      %v1751 = vmax.f32 %v1601, 0.0
      %v1752 = vmax.f32 %v1606, 0.0
      %v1753 = vmax.f32 %v1611, 0.0
      %v1754 = vmax.f32 %v1616, 0.0
      %v1755 = vmax.f32 %v1621, 0.0
      %v1756 = vmax.f32 %v1626, 0.0
      %v1757 = vmax.f32 %v1631, 0.0
      %v1758 = vmax.f32 %v1636, 0.0
      %v1759 = vmax.f32 %v1641, 0.0
      %v1760 = vmax.f32 %v1646, 0.0
      %v1761 = vmax.f32 %v1651, 0.0
      %v1762 = vmax.f32 %v1656, 0.0
      %v1763 = vmax.f32 %v1661, 0.0
      %v1764 = vmax.f32 %v1666, 0.0
      %v1765 = vmax.f32 %v1671, 0.0
      %v1766 = vmax.f32 %v1676, 0.0
      %v1767 = vmax.f32 %v1681, 0.0
      %v1768 = vmax.f32 %v1686, 0.0
      %v1769 = vmax.f32 %v1691, 0.0
      %v1770 = vmax.f32 %v1696, 0.0
      %v1771 = vmax.f32 %v1701, 0.0
      %v1772 = vmax.f32 %v1706, 0.0
      %v1773 = vmax.f32 %v1711, 0.0
      %v1774 = vmax.f32 %v1716, 0.0
      %v1775 = vmax.f32 %v1721, 0.0
      %v1776 = vmax.f32 %v1726, 0.0
      %v1777 = vmax.f32 %v1731, 0.0
      %v1778 = vmax.f32 %v1736, 0.0
      %v1779 = vmax.f32 %v1741, 0.0
      %v1780 = vmax.f32 %v1746, 0.0
      %vm1781 = vcmask 261120
      %1782 = vst.msk [vmem:[%s224] sm:$0xff] %vm1781, %v1749
      %1783 = vst.msk [vmem:[%s224 + $0x8] sm:$0xff] %vm1781, %v1750
      %1784 = vst.msk [vmem:[%s224 + $0x10] sm:$0xff] %vm1781, %v1751
      %1785 = vst.msk [vmem:[%s224 + $0x18] sm:$0xff] %vm1781, %v1752
      %1786 = vst.msk [vmem:[%s224 + $0x20] sm:$0xff] %vm1781, %v1753
      %1787 = vst.msk [vmem:[%s224 + $0x28] sm:$0xff] %vm1781, %v1754
      %1788 = vst.msk [vmem:[%s224 + $0x30] sm:$0xff] %vm1781, %v1755
      %1789 = vst.msk [vmem:[%s224 + $0x38] sm:$0xff] %vm1781, %v1756
      %1790 = vst.msk [vmem:[%s224 + $0x40] sm:$0xff] %vm1781, %v1757
      %1791 = vst.msk [vmem:[%s224 + $0x48] sm:$0xff] %vm1781, %v1758
      %1792 = vst.msk [vmem:[%s224 + $0x50] sm:$0xff] %vm1781, %v1759
      %1793 = vst.msk [vmem:[%s224 + $0x58] sm:$0xff] %vm1781, %v1760
      %1794 = vst.msk [vmem:[%s224 + $0x60] sm:$0xff] %vm1781, %v1761
      %1795 = vst.msk [vmem:[%s224 + $0x68] sm:$0xff] %vm1781, %v1762
      %1796 = vst.msk [vmem:[%s224 + $0x70] sm:$0xff] %vm1781, %v1763
      %1797 = vst.msk [vmem:[%s224 + $0x78] sm:$0xff] %vm1781, %v1764
      %1798 = vst.msk [vmem:[%s224 + $0x80] sm:$0xff] %vm1781, %v1765
      %1799 = vst.msk [vmem:[%s224 + $0x88] sm:$0xff] %vm1781, %v1766
      %1800 = vst.msk [vmem:[%s224 + $0x90] sm:$0xff] %vm1781, %v1767
      %1801 = vst.msk [vmem:[%s224 + $0x98] sm:$0xff] %vm1781, %v1768
      %1802 = vst.msk [vmem:[%s224 + $0xa0] sm:$0xff] %vm1781, %v1769
      %1803 = vst.msk [vmem:[%s224 + $0xa8] sm:$0xff] %vm1781, %v1770
      %1804 = vst.msk [vmem:[%s224 + $0xb0] sm:$0xff] %vm1781, %v1771
      %1805 = vst.msk [vmem:[%s224 + $0xb8] sm:$0xff] %vm1781, %v1772
      %1806 = vst.msk [vmem:[%s224 + $0xc0] sm:$0xff] %vm1781, %v1773
      %1807 = vst.msk [vmem:[%s224 + $0xc8] sm:$0xff] %vm1781, %v1774
      %1808 = vst.msk [vmem:[%s224 + $0xd0] sm:$0xff] %vm1781, %v1775
      %1809 = vst.msk [vmem:[%s224 + $0xd8] sm:$0xff] %vm1781, %v1776
      %1810 = vst.msk [vmem:[%s224 + $0xe0] sm:$0xff] %vm1781, %v1777
      %1811 = vst.msk [vmem:[%s224 + $0xe8] sm:$0xff] %vm1781, %v1778
      %1812 = vst.msk [vmem:[%s224 + $0xf0] sm:$0xff] %vm1781, %v1779
      %1813 = vst.msk [vmem:[%s224 + $0xf8] sm:$0xff] %vm1781, %v1780
      %p1814 = scmp.lt.s32.totalorder %s16, 1
      %s1815 = scalar_select %p1814, %s16, 1
      %s1816 = smul.addr %s1815, 32
      %s1817 = smul.addr %s1816, 8
      %s1818 = scalar_lea.vmem %s5, %s1817
      // Predicated region
      $region41: #{tpu_custom_call.1} parent=39 // pred_check
        %p1819 = pneg %p144
      $region42: #{tpu_custom_call.1} parent=39 // pred_check_branch
        %1821 = sbr.rel (%p1819) target = $region44
      $region43: #{tpu_custom_call.1} parent=39 // pred_region
        _
      $region44: #{tpu_custom_call.1} parent=39 // pred_fallthru
        _
    $region40: #{tpu_custom_call.1} parent=5 // pred_fallthru
      _
    %p1822 = scmp.le.s32.totalorder 2, %s11
    // Predicated region
    $region45: #{tpu_custom_call.1} parent=5 // pred_check
      %p1823 = pneg %p1822
    $region46: #{tpu_custom_call.1} parent=5 // pred_check_branch
      %1825 = sbr.rel (%p1823) target = $region48
    $region47: #{tpu_custom_call.1} parent=5 // pred_region
      %s1826 = ssub.s32 %s11, 2
      // Predicated region
      $region49: #{tpu_custom_call.1} parent=47 // pred_check
        %p1827 = pneg %p150
      $region50: #{tpu_custom_call.1} parent=47 // pred_check_branch
        %1829 = sbr.rel (%p1827) target = $region52
      $region51: #{tpu_custom_call.1} parent=47 // pred_region
        %p1830 = scmp.lt.s32.totalorder %s17, 1
        %s1831 = scalar_select %p1830, %s17, 1
        %s1832 = smul.addr %s1831, 32
        %s1833 = smul.addr %s1832, 8
        %s1834 = scalar_lea.vmem %s5, %s1833
      $region52: #{tpu_custom_call.1} parent=47 // pred_fallthru
        _
    $region48: #{tpu_custom_call.1} parent=5 // pred_fallthru
      _
  $region6: #{tpu_custom_call.1} parent=0 // loop_footer
    %s15 = sadd.s32 1, %s11
  $region7: #{tpu_custom_call.1} parent=0 // loop_footer_branch
    %10 = sbr.rel target = $region3
  $region8: #{tpu_custom_call.1} parent=0 // loop_exit
    _

</llo_original>
